<compile_context>
chip_gen: v7x
topology: tpu7x:2x2x1
jax: 0.10.0
libtpu: 0.0.40
codegen_flags: <defaults>
</compile_context>

<pallas_src>
import jax
import jax.numpy as jnp
from jax.experimental import pallas as pl
from jax.experimental.pallas import tpu as pltpu


def _round_up(x, m):
    return (x + m - 1) // m * m


def _cdiv(a, b):
    return -(-a // b)


def _vmem_block_bytes(shape, dtype):
    """Approximate VMEM bytes of one block after (sublane, lane) tile padding."""
    itemsize = jnp.dtype(dtype).itemsize
    sub = 8 * (4 // itemsize)                      # 8 for f32, 16 for bf16
    lead = 1
    for d in shape[:-2]:
        lead *= int(d)
    rows = _round_up(int(shape[-2]), sub) if len(shape) >= 2 else 1
    cols = _round_up(int(shape[-1]), 128)
    return lead * rows * cols * itemsize


def _make_kernel(num_hops, tm_a, tk, x_resident):
    """Kernel over grid (n_m anchor-blocks [parallel], n_k node-tiles [arbitrary])."""
    rows = num_hops * tm_a

    def kernel(anchor_ref, adj_ref, x_ref, w1_ref, b1_ref, w2_ref, b2_ref,
               out_ref, acc_ref):
        k = pl.program_id(1)

        @pl.when(k == 0)
        def _():
            acc_ref[...] = jnp.zeros_like(acc_ref)

        if x_resident:
            # Node features are a single resident VMEM block; slice the K tile.
            start = pl.multiple_of(k * tk, 128)
            x_tile = x_ref[pl.ds(start, tk), :]
        else:
            x_tile = x_ref[...]

        # Collapse (num_hops, tm_a, tk) -> (num_hops*tm_a, tk); tm_a is a
        # multiple of 16 and tk of 128, so this is a tile-aligned (free) view.
        adj = adj_ref[...].reshape(rows, tk)

        # One tall bf16 MXU matmul per (m, k) tile, f32 accumulate in VMEM.
        acc_ref[...] += jnp.dot(adj, x_tile, preferred_element_type=jnp.float32)

        # Finalize on the last K step: per-row L2 normalize, hop mean, MLP.
        @pl.when(k == pl.num_programs(1) - 1)
        def _():
            hid = acc_ref[...]                               # (rows, in_dim) f32
            ss = jnp.sum(hid * hid, axis=1, keepdims=True)
            hid_n = hid * jax.lax.rsqrt(jnp.maximum(ss, 1e-24))

            anc = anchor_ref[...].astype(jnp.float32)        # (tm_a, in_dim)
            ass = jnp.sum(anc * anc, axis=1, keepdims=True)
            s = anc * jax.lax.rsqrt(jnp.maximum(ass, 1e-24))

            # Sum normalized hop blocks (static, sublane-aligned slices).
            for h in range(num_hops):
                s = s + hid_n[h * tm_a:(h + 1) * tm_a, :]

            mean = s * (1.0 / float(num_hops + 1))
            h1 = jnp.dot(mean, w1_ref[...],
                         preferred_element_type=jnp.float32) + b1_ref[...]
            h1 = jnp.maximum(h1, 0.0)
            out = jnp.dot(h1, w2_ref[...],
                          preferred_element_type=jnp.float32) + b2_ref[...]
            out_ref[...] = out.astype(out_ref.dtype)

    return kernel


@jax.jit
def heter_model_forward(node_feats, anchor_idx, adj_sel, w1, b1, w2, b2):
    """Pallas forward.

    node_feats: [N, in_dim] f32
    anchor_idx: [n_anchor] int32
    adj_sel:    [num_hops, n_anchor, N] f32   (dense adjs[i][arch[i]])
    w1: [in_dim, n_hid]   b1: [1, n_hid]
    w2: [n_hid, n_classes] b2: [1, n_classes]
    returns: [n_anchor, n_classes] f32
    """
    num_hops, n_anchor, n_nodes = adj_sel.shape
    in_dim = node_feats.shape[1]
    n_hid = w1.shape[1]
    n_classes = w2.shape[1]

    # --- M (anchor) tiling: >= 2 "parallel" blocks whenever possible (v7x) ---
    a_pad = _round_up(n_anchor, 16)               # bf16 sublane-tile alignment
    if a_pad >= 32:
        tm_a = min(64, _round_up(_cdiv(a_pad, 2), 16))
    else:
        tm_a = a_pad
    a_pad = _round_up(a_pad, tm_a)
    n_m = a_pad // tm_a
    rows = num_hops * tm_a

    # --- K (node) tiling: biggest tile within a ~14 MiB double-buffer budget --
    n_pad0 = _round_up(n_nodes, 128)
    budget = 14 * 1024 * 1024
    bytes_per_col = 2 * 2 * rows + 2 * 2 * in_dim   # adj + streamed x, bf16, 2-buf
    tk_max = max(128, (budget // bytes_per_col) // 128 * 128)
    n_k = _cdiv(n_pad0, tk_max)
    tk = _round_up(_cdiv(n_pad0, n_k), 128)
    n_pad = n_k * tk

    # Keep node features VMEM-resident across the whole grid if they fit.
    x_resident = (n_k == 1) or (
        _vmem_block_bytes((n_pad, in_dim), jnp.bfloat16) <= 4 * 1024 * 1024)

    # Wrapper glue: data-dependent anchor-row gather + cast + pad (single pass,
    # NO adjacency transpose/re-layout).
    anchor_feats = node_feats[anchor_idx].astype(jnp.float32)
    anchor_feats = jnp.pad(anchor_feats, ((0, a_pad - n_anchor), (0, 0)))
    adj_b = jnp.pad(adj_sel.astype(jnp.bfloat16),
                    ((0, 0), (0, a_pad - n_anchor), (0, n_pad - n_nodes)))
    x_b = jnp.pad(node_feats.astype(jnp.bfloat16),
                  ((0, n_pad - n_nodes), (0, 0)))

    if x_resident:
        x_spec = pl.BlockSpec((n_pad, in_dim), lambda m, k: (0, 0))
    else:
        x_spec = pl.BlockSpec((tk, in_dim), lambda m, k: (k, 0))

    # vmem_limit sized from the actual double-buffered footprint (+headroom).
    est = (2 * _vmem_block_bytes((tm_a, in_dim), jnp.float32)
           + 2 * _vmem_block_bytes((num_hops, tm_a, tk), jnp.bfloat16)
           + 2 * _vmem_block_bytes((n_pad, in_dim) if x_resident else (tk, in_dim),
                                   jnp.bfloat16)
           + 2 * (_vmem_block_bytes((in_dim, n_hid), jnp.float32)
                  + _vmem_block_bytes((1, n_hid), jnp.float32)
                  + _vmem_block_bytes((n_hid, n_classes), jnp.float32)
                  + _vmem_block_bytes((1, n_classes), jnp.float32))
           + 2 * _vmem_block_bytes((tm_a, n_classes), jnp.float32)
           + _vmem_block_bytes((rows, in_dim), jnp.float32))
    vmem_limit = int(min(64 * 1024 * 1024,
                         max(16 * 1024 * 1024, 2 * est + 2 * 1024 * 1024)))

    kernel = _make_kernel(num_hops, tm_a, tk, x_resident)

    out = pl.pallas_call(
        kernel,
        out_shape=jax.ShapeDtypeStruct((a_pad, n_classes), jnp.float32),
        grid_spec=pltpu.PrefetchScalarGridSpec(
            num_scalar_prefetch=0,
            grid=(n_m, n_k),
            in_specs=[
                # anchor features: per anchor-block, resident across K
                pl.BlockSpec((tm_a, in_dim), lambda m, k: (m, 0)),
                # adjacency: all hops of this anchor block x one node tile,
                # streamed straight from the original layout (no re-layout)
                pl.BlockSpec((num_hops, tm_a, tk), lambda m, k: (0, m, k)),
                # node features: resident (sliced in-kernel) or K-streamed
                x_spec,
                # MLP params (small, resident)
                pl.BlockSpec((in_dim, n_hid), lambda m, k: (0, 0)),
                pl.BlockSpec((1, n_hid), lambda m, k: (0, 0)),
                pl.BlockSpec((n_hid, n_classes), lambda m, k: (0, 0)),
                pl.BlockSpec((1, n_classes), lambda m, k: (0, 0)),
            ],
            out_specs=pl.BlockSpec((tm_a, n_classes), lambda m, k: (m, 0)),
            scratch_shapes=[pltpu.VMEM((rows, in_dim), jnp.float32)],
        ),
        compiler_params=pltpu.CompilerParams(
            dimension_semantics=("parallel", "arbitrary"),
            vmem_limit_bytes=vmem_limit),
    )(anchor_feats, adj_b, x_b, w1, b1, w2, b2)

    return out[:n_anchor]


def reference_forward(node_feats, anchor_idx, adj_sel, w1, b1, w2, b2):
    # Pure-JAX reference mirroring the PyTorch module (dropout p=0 == identity),
    # with the same bf16 cast on the aggregation matmul operands as the kernel.
    def l2n(x):
        ss = jnp.sum(x * x, axis=1, keepdims=True)
        return x * jax.lax.rsqrt(jnp.maximum(ss, 1e-24))

    adj_b = adj_sel.astype(jnp.bfloat16)
    x_b = node_feats.astype(jnp.bfloat16)
    seq = [l2n(node_feats[anchor_idx].astype(jnp.float32))]
    for i in range(adj_sel.shape[0]):
        hid = jnp.dot(adj_b[i], x_b, preferred_element_type=jnp.float32)
        seq.append(l2n(hid))
    out = sum(seq) / len(seq)
    out = jnp.maximum(out @ w1 + b1, 0.0)
    return out @ w2 + b2


if __name__ == "__main__":
    key = jax.random.PRNGKey(0)

    # Small synthetic config consistent with the module's forward.
    n_nodes = 512      # total graph nodes
    in_dim = 32        # node feature dim (== agg hidden dim)
    n_hid = 32
    n_classes = 8
    n_anchor = 40      # anchor (labeled) nodes -> 2 parallel M blocks
    num_hops = 3
    n_adjs = 4         # relation types available per hop

    ks = jax.random.split(key, 8)

    node_feats = jax.random.normal(ks[0], (n_nodes, in_dim), jnp.float32)
    anchor_idx = jnp.arange(n_anchor, dtype=jnp.int32) * 2  # deterministic pick

    # Dense adjacency stack: adjs_all[hop][rel] has shape [n_anchor, n_nodes].
    # (torch.spmm with a sparse matrix == dense matmul with its dense form.)
    adjs_all = jax.random.uniform(
        ks[1], (num_hops, n_adjs, n_anchor, n_nodes), jnp.float32)
    adjs_all = adjs_all / jnp.sum(adjs_all, axis=-1, keepdims=True)

    # Architecture choice: which relation to use at each hop.
    arch = [1, 3, 0]
    adj_sel = jnp.stack([adjs_all[i, arch[i]] for i in range(num_hops)])

    # Deterministic parameter init (synthetic; y = x @ W + b convention).
    w1 = 0.05 * jax.random.normal(ks[2], (in_dim, n_hid), jnp.float32)
    b1 = 0.01 * jax.random.normal(ks[3], (1, n_hid), jnp.float32)
    w2 = 0.05 * jax.random.normal(ks[4], (n_hid, n_classes), jnp.float32)
    b2 = 0.01 * jax.random.normal(ks[5], (1, n_classes), jnp.float32)

    out = heter_model_forward(node_feats, anchor_idx, adj_sel, w1, b1, w2, b2)
    out = jax.block_until_ready(out)

    ref = reference_forward(node_feats, anchor_idx, adj_sel, w1, b1, w2, b2)
    assert out.shape == (n_anchor, n_classes)
    max_err = float(jnp.max(jnp.abs(out - ref)))
    assert jnp.allclose(out, ref, atol=1e-3, rtol=1e-3), max_err

    print("KERNEL_OK")
</pallas_src>

<mosaic_0001>
module attributes {stable_mosaic.version = 11 : i64} {
  func.func @kernel(%arg0: i32, %arg1: i32, %arg2: memref<32x32xf32, #tpu.memory_space<vmem>>, %arg3: memref<3x32x512xbf16, #tpu.memory_space<vmem>>, %arg4: memref<512x32xbf16, #tpu.memory_space<vmem>>, %arg5: memref<32x32xf32, #tpu.memory_space<vmem>>, %arg6: memref<1x32xf32, #tpu.memory_space<vmem>>, %arg7: memref<32x8xf32, #tpu.memory_space<vmem>>, %arg8: memref<1x8xf32, #tpu.memory_space<vmem>>, %arg9: memref<32x8xf32, #tpu.memory_space<vmem>>, %arg10: memref<96x32xf32, #tpu.memory_space<vmem>>) attributes {dimension_semantics = [#tpu.dimension_semantics<parallel>, #tpu.dimension_semantics<arbitrary>], iteration_bounds = array<i64: 2, 1>, scalar_prefetch = 0 : i64, scratch_operands = 1 : i64, tpu.core_type = #tpu.core_type<tc>, window_params = [{transform_indices = @transform_0, window_bounds = array<i64: 32, 32>}, {transform_indices = @transform_1, window_bounds = array<i64: 3, 32, 512>}, {pipeline_mode = #tpu.pipeline_mode<synchronous>, transform_indices = @transform_2, window_bounds = array<i64: 512, 32>}, {pipeline_mode = #tpu.pipeline_mode<synchronous>, transform_indices = @transform_3, window_bounds = array<i64: 32, 32>}, {pipeline_mode = #tpu.pipeline_mode<synchronous>, transform_indices = @transform_4, window_bounds = array<i64: 1, 32>}, {pipeline_mode = #tpu.pipeline_mode<synchronous>, transform_indices = @transform_5, window_bounds = array<i64: 32, 8>}, {pipeline_mode = #tpu.pipeline_mode<synchronous>, transform_indices = @transform_6, window_bounds = array<i64: 1, 8>}, {transform_indices = @transform_7, window_bounds = array<i64: 32, 8>}]} {
    %c0_i32 = arith.constant 0 : i32
    %0 = arith.cmpi eq, %arg1, %c0_i32 : i32
    %1 = arith.extui %0 : i1 to i32
    %c0_i32_0 = arith.constant 0 : i32
    %2 = arith.cmpi ne, %1, %c0_i32_0 : i32
    scf.if %2 {
      %cst_10 = arith.constant 0.000000e+00 : f32
      %16 = vector.broadcast %cst_10 : f32 to vector<96x32xf32>
      %c0_11 = arith.constant 0 : index
      %c0_12 = arith.constant 0 : index
      %17 = vector.load %arg10[%c0_11, %c0_12] : memref<96x32xf32, #tpu.memory_space<vmem>>, vector<96x32xf32>
      tpu.vector_store %arg10[%c0_11, %c0_12], %16 {strides = array<i32>} : memref<96x32xf32, #tpu.memory_space<vmem>>, vector<96x32xf32>,
    } else {
    }
    %c512_i32 = arith.constant 512 : i32
    %3 = arith.muli %arg1, %c512_i32 : i32
    %4 = tpu.assume_multiple %3, 128 : i32
    %5 = arith.index_cast %4 : i32 to index
    %c0 = arith.constant 0 : index
    %6 = vector.load %arg4[%5, %c0] : memref<512x32xbf16, #tpu.memory_space<vmem>>, vector<512x32xbf16>
    %c0_1 = arith.constant 0 : index
    %c0_2 = arith.constant 0 : index
    %c0_3 = arith.constant 0 : index
    %7 = vector.load %arg3[%c0_1, %c0_2, %c0_3] : memref<3x32x512xbf16, #tpu.memory_space<vmem>>, vector<3x32x512xbf16>
    %8 = vector.shape_cast %7 : vector<3x32x512xbf16> to vector<96x512xbf16>
    %c0_4 = arith.constant 0 : index
    %c0_5 = arith.constant 0 : index
    %9 = vector.load %arg10[%c0_4, %c0_5] : memref<96x32xf32, #tpu.memory_space<vmem>>, vector<96x32xf32>
    %cst = arith.constant dense<0.000000e+00> : vector<96x32xf32>
    %10 = tpu.matmul %8, %6, %cst {dimension_numbers = #tpu.dot_dimension_numbers<[1], [0], [0], [1], [0, 0, 1, 1], [], []>} : vector<96x512xbf16>, vector<512x32xbf16>, vector<96x32xf32> -> vector<96x32xf32>
    %11 = arith.addf %9, %10 : vector<96x32xf32>
    %c0_6 = arith.constant 0 : index
    %c0_7 = arith.constant 0 : index
    %12 = vector.load %arg10[%c0_6, %c0_7] : memref<96x32xf32, #tpu.memory_space<vmem>>, vector<96x32xf32>
    tpu.vector_store %arg10[%c0_6, %c0_7], %11 {strides = array<i32>} : memref<96x32xf32, #tpu.memory_space<vmem>>, vector<96x32xf32>,
    %c0_i32_8 = arith.constant 0 : i32
    %13 = arith.cmpi eq, %arg1, %c0_i32_8 : i32
    %14 = arith.extui %13 : i1 to i32
    %c0_i32_9 = arith.constant 0 : i32
    %15 = arith.cmpi ne, %14, %c0_i32_9 : i32
    scf.if %15 {
      %c0_10 = arith.constant 0 : index
      %c0_11 = arith.constant 0 : index
      %16 = vector.load %arg10[%c0_10, %c0_11] : memref<96x32xf32, #tpu.memory_space<vmem>>, vector<96x32xf32>
      %17 = arith.mulf %16, %16 : vector<96x32xf32>
      %cst_12 = arith.constant dense<0.000000e+00> : vector<96xf32>
      %18 = vector.multi_reduction <add>, %17, %cst_12 [1] : vector<96x32xf32> to vector<96xf32>
      %19 = vector.shape_cast %18 : vector<96xf32> to vector<96x1xf32>
      %cst_13 = arith.constant 1.000000e-24 : f32
      %20 = vector.broadcast %cst_13 : f32 to vector<96x1xf32>
      %21 = arith.maximumf %19, %20 : vector<96x1xf32>
      %22 = math.rsqrt %21 : vector<96x1xf32>
      %23 = vector.broadcast %22 : vector<96x1xf32> to vector<96x32xf32>
      %24 = arith.mulf %16, %23 : vector<96x32xf32>
      %c0_14 = arith.constant 0 : index
      %c0_15 = arith.constant 0 : index
      %25 = vector.load %arg2[%c0_14, %c0_15] : memref<32x32xf32, #tpu.memory_space<vmem>>, vector<32x32xf32>
      %26 = arith.mulf %25, %25 : vector<32x32xf32>
      %cst_16 = arith.constant dense<0.000000e+00> : vector<32xf32>
      %27 = vector.multi_reduction <add>, %26, %cst_16 [1] : vector<32x32xf32> to vector<32xf32>
      %28 = vector.shape_cast %27 : vector<32xf32> to vector<32x1xf32>
      %cst_17 = arith.constant 1.000000e-24 : f32
      %29 = vector.broadcast %cst_17 : f32 to vector<32x1xf32>
      %30 = arith.maximumf %28, %29 : vector<32x1xf32>
      %31 = math.rsqrt %30 : vector<32x1xf32>
      %32 = vector.broadcast %31 : vector<32x1xf32> to vector<32x32xf32>
      %33 = arith.mulf %25, %32 : vector<32x32xf32>
      %34 = vector.extract_strided_slice %24 {offsets = [0, 0], sizes = [32, 32], strides = [1, 1]} : vector<96x32xf32> to vector<32x32xf32>
      %35 = arith.addf %33, %34 : vector<32x32xf32>
      %36 = vector.extract_strided_slice %24 {offsets = [32, 0], sizes = [32, 32], strides = [1, 1]} : vector<96x32xf32> to vector<32x32xf32>
      %37 = arith.addf %35, %36 : vector<32x32xf32>
      %38 = vector.extract_strided_slice %24 {offsets = [64, 0], sizes = [32, 32], strides = [1, 1]} : vector<96x32xf32> to vector<32x32xf32>
      %39 = arith.addf %37, %38 : vector<32x32xf32>
      %cst_18 = arith.constant 2.500000e-01 : f32
      %40 = vector.broadcast %cst_18 : f32 to vector<32x32xf32>
      %41 = arith.mulf %39, %40 : vector<32x32xf32>
      %c0_19 = arith.constant 0 : index
      %c0_20 = arith.constant 0 : index
      %42 = vector.load %arg5[%c0_19, %c0_20] : memref<32x32xf32, #tpu.memory_space<vmem>>, vector<32x32xf32>
      %cst_21 = arith.constant dense<0.000000e+00> : vector<32x32xf32>
      %43 = tpu.matmul %41, %42, %cst_21 {dimension_numbers = #tpu.dot_dimension_numbers<[1], [0], [0], [1], [0, 0, 1, 1], [], []>} : vector<32x32xf32>, vector<32x32xf32>, vector<32x32xf32> -> vector<32x32xf32>
      %c0_22 = arith.constant 0 : index
      %c0_23 = arith.constant 0 : index
      %44 = vector.load %arg6[%c0_22, %c0_23] : memref<1x32xf32, #tpu.memory_space<vmem>>, vector<1x32xf32>
      %45 = vector.broadcast %44 : vector<1x32xf32> to vector<32x32xf32>
      %46 = arith.addf %43, %45 : vector<32x32xf32>
      %cst_24 = arith.constant 0.000000e+00 : f32
      %47 = vector.broadcast %cst_24 : f32 to vector<32x32xf32>
      %48 = arith.maximumf %46, %47 : vector<32x32xf32>
      %c0_25 = arith.constant 0 : index
      %c0_26 = arith.constant 0 : index
      %49 = vector.load %arg7[%c0_25, %c0_26] : memref<32x8xf32, #tpu.memory_space<vmem>>, vector<32x8xf32>
      %cst_27 = arith.constant dense<0.000000e+00> : vector<32x8xf32>
      %50 = tpu.matmul %48, %49, %cst_27 {dimension_numbers = #tpu.dot_dimension_numbers<[1], [0], [0], [1], [0, 0, 1, 1], [], []>} : vector<32x32xf32>, vector<32x8xf32>, vector<32x8xf32> -> vector<32x8xf32>
      %c0_28 = arith.constant 0 : index
      %c0_29 = arith.constant 0 : index
      %51 = vector.load %arg8[%c0_28, %c0_29] : memref<1x8xf32, #tpu.memory_space<vmem>>, vector<1x8xf32>
      %52 = vector.broadcast %51 : vector<1x8xf32> to vector<32x8xf32>
      %53 = arith.addf %50, %52 : vector<32x8xf32>
      %c0_30 = arith.constant 0 : index
      %c0_31 = arith.constant 0 : index
      %54 = vector.load %arg9[%c0_30, %c0_31] : memref<32x8xf32, #tpu.memory_space<vmem>>, vector<32x8xf32>
      tpu.vector_store %arg9[%c0_30, %c0_31], %53 {strides = array<i32>} : memref<32x8xf32, #tpu.memory_space<vmem>>, vector<32x8xf32>,
    } else {
    }
    return
  }
  func.func @transform_0(%arg0: i32, %arg1: i32) -> (i32, i32) {
    %c0_i32 = arith.constant 0 : i32
    %c0_i32_0 = arith.constant 0 : i32
    return %arg0, %c0_i32 : i32, i32
  }
  func.func @transform_1(%arg0: i32, %arg1: i32) -> (i32, i32, i32) {
    %c0_i32 = arith.constant 0 : i32
    %c0_i32_0 = arith.constant 0 : i32
    return %c0_i32, %arg0, %arg1 : i32, i32, i32
  }
  func.func @transform_2(%arg0: i32, %arg1: i32) -> (i32, i32) {
    %c0_i32 = arith.constant 0 : i32
    %c0_i32_0 = arith.constant 0 : i32
    %c0_i32_1 = arith.constant 0 : i32
    return %c0_i32, %c0_i32_0 : i32, i32
  }
  func.func @transform_3(%arg0: i32, %arg1: i32) -> (i32, i32) {
    %c0_i32 = arith.constant 0 : i32
    %c0_i32_0 = arith.constant 0 : i32
    %c0_i32_1 = arith.constant 0 : i32
    return %c0_i32, %c0_i32_0 : i32, i32
  }
  func.func @transform_4(%arg0: i32, %arg1: i32) -> (i32, i32) {
    %c0_i32 = arith.constant 0 : i32
    %c0_i32_0 = arith.constant 0 : i32
    %c0_i32_1 = arith.constant 0 : i32
    return %c0_i32, %c0_i32_0 : i32, i32
  }
  func.func @transform_5(%arg0: i32, %arg1: i32) -> (i32, i32) {
    %c0_i32 = arith.constant 0 : i32
    %c0_i32_0 = arith.constant 0 : i32
    %c0_i32_1 = arith.constant 0 : i32
    return %c0_i32, %c0_i32_0 : i32, i32
  }
  func.func @transform_6(%arg0: i32, %arg1: i32) -> (i32, i32) {
    %c0_i32 = arith.constant 0 : i32
    %c0_i32_0 = arith.constant 0 : i32
    %c0_i32_1 = arith.constant 0 : i32
    return %c0_i32, %c0_i32_0 : i32, i32
  }
  func.func @transform_7(%arg0: i32, %arg1: i32) -> (i32, i32) {
    %c0_i32 = arith.constant 0 : i32
    %c0_i32_0 = arith.constant 0 : i32
    return %arg0, %c0_i32 : i32, i32
  }
}

</mosaic_0001>

<llo_original>
// kernel: heter_model_forward.1
$region0: #{heter_model_forward.1}
  #allocation0 [shape = 'u32[]', space=smem, size = 0x4, offset = 0x4, fixed_abs, tag = 'smem constant byte address 0x4 - core index']
  #allocation1 [shape = 'u32[144,128]{1,0:T(1,128)}', space=vmem, size = 0x12000, scoped, tag = 'internal scratch']
  #allocation2 [shape = 'f32[96,32]{1,0:T(8,128)}', space=vmem, size = 0xc000, scoped, tag = 'scratch operand']
  %s0 = inlined_call_operand.vmem [shape: f32[64,32], index: 0, kind: input, shape index: {}]
  %s1 = inlined_call_operand.vmem [shape: bf16[3,64,512], index: 1, kind: input, shape index: {}]
  %s2 = inlined_call_operand.vmem [shape: bf16[512,32], index: 2, kind: input, shape index: {}]
  %s3 = inlined_call_operand.vmem [shape: f32[32,32], index: 3, kind: input, shape index: {}]
  %s4 = inlined_call_operand.vmem [shape: f32[1,32], index: 4, kind: input, shape index: {}]
  %s5 = inlined_call_operand.vmem [shape: f32[32,8], index: 5, kind: input, shape index: {}]
  %s6 = inlined_call_operand.vmem [shape: f32[1,8], index: 6, kind: input, shape index: {}]
  %s7 = inlined_call_operand.vmem [shape: f32[64,8], index: 7, kind: output, shape index: {}]
  %s8 = sld [smem:[#allocation0]]
  $region92: #{heter_model_forward.1} parent=0
    _
  %s10 = ssub.s32 1, %s8
  %s11 = scalar_select 0, %s10, %s8
  $region1: #{heter_model_forward.1} parent=0
    #allocation3 [shape = 'u8[196608]{0}', space=vmem, size = 0x30000, scoped, tag = 'input window, operand 1']
    loop: start=0, step=1, limit=4
    $region2: #{heter_model_forward.1} parent=1 // loop_pre_header
      _
    $region3: #{heter_model_forward.1} parent=1 // loop_header
      %s13 = sphi 0, %s17
      %p14 = scmp.ge.s32.totalorder %s13, 4
      %s20 = sphi 0, %s32
      %s21 = sphi 0, %s28
      %s22 = sphi 0, %s20
      %s23 = sphi 0, %s21
      %s24 = sphi 0, %s22
      %s25 = sphi 0, %s23
      %s35 = sphi 0, %s37
      %s38 = sphi 0, %s35
      %s39 = sphi 0, %s38
      %s55 = sphi 0, %s39
      %s63 = sphi 0, %s65
      %s66 = sphi 0, %s63
      %s67 = sphi 0, %s66
      %s83 = sphi 0, %s67
      %s87 = sphi 0, %s87
      %s89 = sphi 0, %s87
      %s90 = sphi 0, %s89
      %s104 = sphi 0, %s90
      %s108 = sphi 0, %s108
      %s110 = sphi 0, %s108
      %s111 = sphi 0, %s110
      %s125 = sphi 0, %s111
      %s129 = sphi 0, %s129
      %s131 = sphi 0, %s129
      %s132 = sphi 0, %s131
      %s146 = sphi 0, %s132
      %s150 = sphi 0, %s150
      %s152 = sphi 0, %s150
      %s153 = sphi 0, %s152
      %s167 = sphi 0, %s153
      %s171 = sphi 0, %s171
      %s173 = sphi 0, %s171
      %s174 = sphi 0, %s173
      %s188 = sphi 0, %s174
      %s194 = sphi 0, %s196
      %s197 = sphi 0, %s194
      %s198 = sphi 0, %s197
      %s214 = sphi 0, %s198
    $region4: #{heter_model_forward.1} parent=1 // loop_header_branch
      %16 = sbr.rel (%p14) target = $region8
    $region5: #{heter_model_forward.1} parent=1 // loop_body
      %s18 = ssub.s32 %s13, 1
      %s19 = ssub.s32 %s13, 2
      %s26 = sadd.s32 1, %s21
      %p27 = scmp.ge.s32.totalorder %s26, 1
      %s28 = scalar_select %p27, 0, %s26
      %s29 = sadd.s32 1, %s20
      %s30 = scalar_select %p27, %s29, %s20
      %p31 = scmp.ge.s32.totalorder %s30, 2
      %s32 = scalar_select %p31, 0, %s30
      %s33 = ssub.s32 %s20, %s32
      %p34 = scmp.eq.s32.totalorder %s33, 0
      %s36 = sadd.s32 %s35, 1
      %s37 = scalar_select %p34, %s35, %s36
      %p40 = pneg %p34
      %p41 = scmp.eq.s32.totalorder %s13, 1
      %p42 = por %p40, %p41
      %p43 = scmp.ne.s32.totalorder %s35, %s38
      %p44 = scmp.eq.s32.totalorder %s13, 0
      %p45 = por %p43, %p44
      %p46 = scmp.ne.s32.totalorder %s35, %s38
      %p47 = scmp.eq.s32.totalorder %s18, 1
      %p48 = por %p46, %p47
      %p49 = scmp.ne.s32.totalorder %s38, %s39
      %p50 = scmp.eq.s32.totalorder %s18, 0
      %p51 = por %p49, %p50
      %p52 = scmp.ne.s32.totalorder %s38, %s39
      %p53 = scmp.eq.s32.totalorder %s19, 1
      %p54 = por %p52, %p53
      %p56 = scmp.ne.s32.totalorder %s39, %s55
      %p57 = scmp.eq.s32.totalorder %s19, 0
      %p58 = por %p56, %p57
      %s59 = ssub.s32 %s20, %s32
      %s60 = ssub.s32 %s21, %s28
      %s61 = sor.u32 %s59, %s60
      %p62 = scmp.eq.s32.totalorder %s61, 0
      %s64 = sadd.s32 %s63, 1
      %s65 = scalar_select %p62, %s63, %s64
      %p68 = pneg %p62
      %p69 = scmp.eq.s32.totalorder %s13, 1
      %p70 = por %p68, %p69
      %p71 = scmp.ne.s32.totalorder %s63, %s66
      %p72 = scmp.eq.s32.totalorder %s13, 0
      %p73 = por %p71, %p72
      %p74 = scmp.ne.s32.totalorder %s63, %s66
      %p75 = scmp.eq.s32.totalorder %s18, 1
      %p76 = por %p74, %p75
      %p77 = scmp.ne.s32.totalorder %s66, %s67
      %p78 = scmp.eq.s32.totalorder %s18, 0
      %p79 = por %p77, %p78
      %p80 = scmp.ne.s32.totalorder %s66, %s67
      %p81 = scmp.eq.s32.totalorder %s19, 1
      %p82 = por %p80, %p81
      %p84 = scmp.ne.s32.totalorder %s67, %s83
      %p85 = scmp.eq.s32.totalorder %s19, 0
      %p86 = por %p84, %p85
      %s88 = sadd.s32 %s87, 1
      %p91 = scmp.eq.s32.totalorder %s13, 1
      %p92 = scmp.ne.s32.totalorder %s87, %s89
      %p93 = scmp.eq.s32.totalorder %s13, 0
      %p94 = por %p92, %p93
      %p95 = scmp.ne.s32.totalorder %s87, %s89
      %p96 = scmp.eq.s32.totalorder %s18, 1
      %p97 = por %p95, %p96
      %p98 = scmp.ne.s32.totalorder %s89, %s90
      %p99 = scmp.eq.s32.totalorder %s18, 0
      %p100 = por %p98, %p99
      %p101 = scmp.ne.s32.totalorder %s89, %s90
      %p102 = scmp.eq.s32.totalorder %s19, 1
      %p103 = por %p101, %p102
      %p105 = scmp.ne.s32.totalorder %s90, %s104
      %p106 = scmp.eq.s32.totalorder %s19, 0
      %p107 = por %p105, %p106
      %s109 = sadd.s32 %s108, 1
      %p112 = scmp.eq.s32.totalorder %s13, 1
      %p113 = scmp.ne.s32.totalorder %s108, %s110
      %p114 = scmp.eq.s32.totalorder %s13, 0
      %p115 = por %p113, %p114
      %p116 = scmp.ne.s32.totalorder %s108, %s110
      %p117 = scmp.eq.s32.totalorder %s18, 1
      %p118 = por %p116, %p117
      %p119 = scmp.ne.s32.totalorder %s110, %s111
      %p120 = scmp.eq.s32.totalorder %s18, 0
      %p121 = por %p119, %p120
      %p122 = scmp.ne.s32.totalorder %s110, %s111
      %p123 = scmp.eq.s32.totalorder %s19, 1
      %p124 = por %p122, %p123
      %p126 = scmp.ne.s32.totalorder %s111, %s125
      %p127 = scmp.eq.s32.totalorder %s19, 0
      %p128 = por %p126, %p127
      %s130 = sadd.s32 %s129, 1
      %p133 = scmp.eq.s32.totalorder %s13, 1
      %p134 = scmp.ne.s32.totalorder %s129, %s131
      %p135 = scmp.eq.s32.totalorder %s13, 0
      %p136 = por %p134, %p135
      %p137 = scmp.ne.s32.totalorder %s129, %s131
      %p138 = scmp.eq.s32.totalorder %s18, 1
      %p139 = por %p137, %p138
      %p140 = scmp.ne.s32.totalorder %s131, %s132
      %p141 = scmp.eq.s32.totalorder %s18, 0
      %p142 = por %p140, %p141
      %p143 = scmp.ne.s32.totalorder %s131, %s132
      %p144 = scmp.eq.s32.totalorder %s19, 1
      %p145 = por %p143, %p144
      %p147 = scmp.ne.s32.totalorder %s132, %s146
      %p148 = scmp.eq.s32.totalorder %s19, 0
      %p149 = por %p147, %p148
      %s151 = sadd.s32 %s150, 1
      %p154 = scmp.eq.s32.totalorder %s13, 1
      %p155 = scmp.ne.s32.totalorder %s150, %s152
      %p156 = scmp.eq.s32.totalorder %s13, 0
      %p157 = por %p155, %p156
      %p158 = scmp.ne.s32.totalorder %s150, %s152
      %p159 = scmp.eq.s32.totalorder %s18, 1
      %p160 = por %p158, %p159
      %p161 = scmp.ne.s32.totalorder %s152, %s153
      %p162 = scmp.eq.s32.totalorder %s18, 0
      %p163 = por %p161, %p162
      %p164 = scmp.ne.s32.totalorder %s152, %s153
      %p165 = scmp.eq.s32.totalorder %s19, 1
      %p166 = por %p164, %p165
      %p168 = scmp.ne.s32.totalorder %s153, %s167
      %p169 = scmp.eq.s32.totalorder %s19, 0
      %p170 = por %p168, %p169
      %s172 = sadd.s32 %s171, 1
      %p175 = scmp.eq.s32.totalorder %s13, 1
      %p176 = scmp.ne.s32.totalorder %s171, %s173
      %p177 = scmp.eq.s32.totalorder %s13, 0
      %p178 = por %p176, %p177
      %p179 = scmp.ne.s32.totalorder %s171, %s173
      %p180 = scmp.eq.s32.totalorder %s18, 1
      %p181 = por %p179, %p180
      %p182 = scmp.ne.s32.totalorder %s173, %s174
      %p183 = scmp.eq.s32.totalorder %s18, 0
      %p184 = por %p182, %p183
      %p185 = scmp.ne.s32.totalorder %s173, %s174
      %p186 = scmp.eq.s32.totalorder %s19, 1
      %p187 = por %p185, %p186
      %p189 = scmp.ne.s32.totalorder %s174, %s188
      %p190 = scmp.eq.s32.totalorder %s19, 0
      %p191 = por %p189, %p190
      %s192 = ssub.s32 %s20, %s32
      %p193 = scmp.eq.s32.totalorder %s192, 0
      %s195 = sadd.s32 %s194, 1
      %s196 = scalar_select %p193, %s194, %s195
      %p199 = pneg %p193
      %p200 = scmp.eq.s32.totalorder %s13, 1
      %p201 = por %p199, %p200
      %p202 = scmp.ne.s32.totalorder %s194, %s197
      %p203 = scmp.eq.s32.totalorder %s13, 0
      %p204 = por %p202, %p203
      %p205 = scmp.ne.s32.totalorder %s194, %s197
      %p206 = scmp.eq.s32.totalorder %s18, 1
      %p207 = por %p205, %p206
      %p208 = scmp.ne.s32.totalorder %s197, %s198
      %p209 = scmp.eq.s32.totalorder %s18, 0
      %p210 = por %p208, %p209
      %p211 = scmp.ne.s32.totalorder %s197, %s198
      %p212 = scmp.eq.s32.totalorder %s19, 1
      %p213 = por %p211, %p212
      %p215 = scmp.ne.s32.totalorder %s198, %s214
      %p216 = scmp.eq.s32.totalorder %s19, 0
      %p217 = por %p215, %p216
      %p218 = scmp.le.s32.totalorder 1, %s13
      %p219 = scmp.lt.s32.totalorder %s13, 3
      %p220 = pnand %p218, %p219
      %p221 = pneg %p220
      // Predicated region
      $region9: #{heter_model_forward.1} parent=5 // pred_check
        _
      $region10: #{heter_model_forward.1} parent=5 // pred_check_branch
        %223 = sbr.rel (%p220) target = $region12
      $region11: #{heter_model_forward.1} parent=5 // pred_region
        %s224 = ssub.s32 %s13, 1
        // Predicated region
        $region13: #{heter_model_forward.1} parent=11 // pred_check
          %p225 = pneg %p100
        $region14: #{heter_model_forward.1} parent=11 // pred_check_branch
          %227 = sbr.rel (%p225) target = $region16
        $region15: #{heter_model_forward.1} parent=11 // pred_region
          _
        $region16: #{heter_model_forward.1} parent=11 // pred_fallthru
          _
        // Predicated region
        $region17: #{heter_model_forward.1} parent=11 // pred_check
          %p228 = pneg %p121
        $region18: #{heter_model_forward.1} parent=11 // pred_check_branch
          %230 = sbr.rel (%p228) target = $region20
        $region19: #{heter_model_forward.1} parent=11 // pred_region
          _
        $region20: #{heter_model_forward.1} parent=11 // pred_fallthru
          _
        // Predicated region
        $region21: #{heter_model_forward.1} parent=11 // pred_check
          %p231 = pneg %p142
        $region22: #{heter_model_forward.1} parent=11 // pred_check_branch
          %233 = sbr.rel (%p231) target = $region24
        $region23: #{heter_model_forward.1} parent=11 // pred_region
          _
        $region24: #{heter_model_forward.1} parent=11 // pred_fallthru
          _
        // Predicated region
        $region25: #{heter_model_forward.1} parent=11 // pred_check
          %p234 = pneg %p163
        $region26: #{heter_model_forward.1} parent=11 // pred_check_branch
          %236 = sbr.rel (%p234) target = $region28
        $region27: #{heter_model_forward.1} parent=11 // pred_region
          _
        $region28: #{heter_model_forward.1} parent=11 // pred_fallthru
          _
        // Predicated region
        $region29: #{heter_model_forward.1} parent=11 // pred_check
          %p237 = pneg %p184
        $region30: #{heter_model_forward.1} parent=11 // pred_check_branch
          %239 = sbr.rel (%p237) target = $region32
        $region31: #{heter_model_forward.1} parent=11 // pred_region
          _
        $region32: #{heter_model_forward.1} parent=11 // pred_fallthru
          _
      $region12: #{heter_model_forward.1} parent=5 // pred_fallthru
        _
      %p240 = scmp.lt.s32.totalorder %s13, 2
      // Predicated region
      $region33: #{heter_model_forward.1} parent=5 // pred_check
        %p241 = pneg %p240
      $region34: #{heter_model_forward.1} parent=5 // pred_check_branch
        %243 = sbr.rel (%p241) target = $region36
      $region35: #{heter_model_forward.1} parent=5 // pred_region
        // Predicated region
        $region37: #{heter_model_forward.1} parent=35 // pred_check
          %p244 = pneg %p45
        $region38: #{heter_model_forward.1} parent=35 // pred_check_branch
          %246 = sbr.rel (%p244) target = $region40
        $region39: #{heter_model_forward.1} parent=35 // pred_region
          %s247 = smul.u32 4, %s20
          %p248 = scmp.lt.s32.totalorder %s247, 7
          %s249 = scalar_select %p248, %s247, 7
          %s250 = smul.addr %s249, 8
          %s251 = scalar_lea.vmem %s0, %s250
          %s252 = smul.u32 4, %s20
        $region40: #{heter_model_forward.1} parent=35 // pred_fallthru
          _
        // Predicated region
        $region41: #{heter_model_forward.1} parent=35 // pred_check
          %p253 = pneg %p73
        $region42: #{heter_model_forward.1} parent=35 // pred_check_branch
          %255 = sbr.rel (%p253) target = $region44
        $region43: #{heter_model_forward.1} parent=35 // pred_region
          %s256 = sand.u32 %s63, 1
          %s257 = sand.u32 %s63, 1
          %s258 = smul.addr %s257, 192
          %s259 = scalar_lea.vmem [#allocation3], %s258
          %s260 = smul.u32 4, %s20
          %s261 = smul.u32 4, %s21
          %s262 = smul.addr %s260, 4
          %s263 = sadd.s32 %s261, %s262
          %s264 = smul.addr %s263, 4
          %s265 = scalar_lea.vmem %s1, %s264
          // Predicated region
          $region45: #{heter_model_forward.1} parent=43 // pred_check
            _
          $region46: #{heter_model_forward.1} parent=43 // pred_check_branch
            %267 = sbr.rel (0) target = $region48
          $region47: #{heter_model_forward.1} parent=43 // pred_region
            // Predicated region
            $region49: #{heter_model_forward.1} parent=47 // pred_check
              _
            $region50: #{heter_model_forward.1} parent=47 // pred_check_branch
              %269 = sbr.rel (0) target = $region52
            $region51: #{heter_model_forward.1} parent=47 // pred_region
              loop: start=0, step=1, limit=1
              $region53: #{heter_model_forward.1} parent=51 // loop_pre_header
                _
              $region54: #{heter_model_forward.1} parent=51 // loop_header
                %s271 = sphi 0, %s275
                %p272 = scmp.ge.s32.totalorder %s271, 1
                %s276 = sphi %s265, %s265
                %s277 = sphi %s259, %s259
              $region55: #{heter_model_forward.1} parent=51 // loop_header_branch
                %274 = sbr.rel (%p272) target = $region59
              $region56: #{heter_model_forward.1} parent=51 // loop_body
                %v278 = vld [vmem:[%s276] sm:$0xff]
                %279 = vst [vmem:[%s277] sm:$0xff] %v278
                %v280 = vld [vmem:[%s276 + $0x8] sm:$0xff]
                %281 = vst [vmem:[%s277 + $0x8] sm:$0xff] %v280
                %v282 = vld [vmem:[%s276 + $0x10] sm:$0xff]
                %283 = vst [vmem:[%s277 + $0x10] sm:$0xff] %v282
                %v284 = vld [vmem:[%s276 + $0x18] sm:$0xff]
                %285 = vst [vmem:[%s277 + $0x18] sm:$0xff] %v284
                %v286 = vld [vmem:[%s276 + $0x20] sm:$0xff]
                %287 = vst [vmem:[%s277 + $0x20] sm:$0xff] %v286
                %v288 = vld [vmem:[%s276 + $0x28] sm:$0xff]
                %289 = vst [vmem:[%s277 + $0x28] sm:$0xff] %v288
                %v290 = vld [vmem:[%s276 + $0x30] sm:$0xff]
                %291 = vst [vmem:[%s277 + $0x30] sm:$0xff] %v290
                %v292 = vld [vmem:[%s276 + $0x38] sm:$0xff]
                %293 = vst [vmem:[%s277 + $0x38] sm:$0xff] %v292
                %v294 = vld [vmem:[%s276 + $0x80] sm:$0xff]
                %295 = vst [vmem:[%s277 + $0x40] sm:$0xff] %v294
                %v296 = vld [vmem:[%s276 + $0x88] sm:$0xff]
                %297 = vst [vmem:[%s277 + $0x48] sm:$0xff] %v296
                %v298 = vld [vmem:[%s276 + $0x90] sm:$0xff]
                %299 = vst [vmem:[%s277 + $0x50] sm:$0xff] %v298
                %v300 = vld [vmem:[%s276 + $0x98] sm:$0xff]
                %301 = vst [vmem:[%s277 + $0x58] sm:$0xff] %v300
                %v302 = vld [vmem:[%s276 + $0xa0] sm:$0xff]
                %303 = vst [vmem:[%s277 + $0x60] sm:$0xff] %v302
                %v304 = vld [vmem:[%s276 + $0xa8] sm:$0xff]
                %305 = vst [vmem:[%s277 + $0x68] sm:$0xff] %v304
                %v306 = vld [vmem:[%s276 + $0xb0] sm:$0xff]
                %307 = vst [vmem:[%s277 + $0x70] sm:$0xff] %v306
                %v308 = vld [vmem:[%s276 + $0xb8] sm:$0xff]
                %309 = vst [vmem:[%s277 + $0x78] sm:$0xff] %v308
                %v310 = vld [vmem:[%s276 + $0x100] sm:$0xff]
                %311 = vst [vmem:[%s277 + $0x80] sm:$0xff] %v310
                %v312 = vld [vmem:[%s276 + $0x108] sm:$0xff]
                %313 = vst [vmem:[%s277 + $0x88] sm:$0xff] %v312
                %v314 = vld [vmem:[%s276 + $0x110] sm:$0xff]
                %315 = vst [vmem:[%s277 + $0x90] sm:$0xff] %v314
                %v316 = vld [vmem:[%s276 + $0x118] sm:$0xff]
                %317 = vst [vmem:[%s277 + $0x98] sm:$0xff] %v316
                %v318 = vld [vmem:[%s276 + $0x120] sm:$0xff]
                %319 = vst [vmem:[%s277 + $0xa0] sm:$0xff] %v318
                %v320 = vld [vmem:[%s276 + $0x128] sm:$0xff]
                %321 = vst [vmem:[%s277 + $0xa8] sm:$0xff] %v320
                %v322 = vld [vmem:[%s276 + $0x130] sm:$0xff]
                %323 = vst [vmem:[%s277 + $0xb0] sm:$0xff] %v322
                %v324 = vld [vmem:[%s276 + $0x138] sm:$0xff]
                %325 = vst [vmem:[%s277 + $0xb8] sm:$0xff] %v324
              $region57: #{heter_model_forward.1} parent=51 // loop_footer
                %s275 = sadd.s32 1, %s271
              $region58: #{heter_model_forward.1} parent=51 // loop_footer_branch
                %270 = sbr.rel target = $region54
              $region59: #{heter_model_forward.1} parent=51 // loop_exit
                _
            $region52: #{heter_model_forward.1} parent=47 // pred_fallthru
              _
            // Predicated region
            $region60: #{heter_model_forward.1} parent=47 // pred_check
              _
            $region61: #{heter_model_forward.1} parent=47 // pred_check_branch
              %327 = sbr.rel target = $region63
            $region62: #{heter_model_forward.1} parent=47 // pred_region
              _
            $region63: #{heter_model_forward.1} parent=47 // pred_fallthru
              _
          $region48: #{heter_model_forward.1} parent=43 // pred_fallthru
            _
          %328 = vnop
        $region44: #{heter_model_forward.1} parent=35 // pred_fallthru
          _
      $region36: #{heter_model_forward.1} parent=5 // pred_fallthru
        _
      %p329 = scmp.le.s32.totalorder 1, %s13
      %p330 = scmp.lt.s32.totalorder %s13, 3
      %p331 = pnand %p329, %p330
      %p332 = pneg %p331
      // Predicated region
      $region64: #{heter_model_forward.1} parent=5 // pred_check
        _
      $region65: #{heter_model_forward.1} parent=5 // pred_check_branch
        %334 = sbr.rel (%p331) target = $region67
      $region66: #{heter_model_forward.1} parent=5 // pred_region
        %s335 = ssub.s32 %s13, 1
        %s336 = sand.u32 %s66, 1
        %s337 = sand.u32 %s66, 1
        %s338 = smul.addr %s337, 192
        %s339 = scalar_lea.vmem [#allocation3], %s338
        // Predicated region
        $region68: #{heter_model_forward.1} parent=66 // pred_check
          %p340 = pneg %p79
        $region69: #{heter_model_forward.1} parent=66 // pred_check_branch
          %342 = sbr.rel (%p340) target = $region71
        $region70: #{heter_model_forward.1} parent=66 // pred_region
          _
        $region71: #{heter_model_forward.1} parent=66 // pred_fallthru
          _
        %s343 = smul.u32 4, %s22
        %p344 = scmp.lt.s32.totalorder %s343, 7
        %s345 = scalar_select %p344, %s343, 7
        %s346 = smul.addr %s345, 8
        %s347 = scalar_lea.vmem %s0, %s346
        %p348 = pneg %p51
        %p349 = pneg %p48
        %s350 = sand.u32 %s66, 1
        %s351 = sand.u32 %s66, 1
        %s352 = smul.addr %s351, 192
        %s353 = scalar_lea.vmem [#allocation3], %s352
        %p354 = pneg %p79
        %p355 = pneg %p76
        %p356 = pneg %p100
        %p357 = pneg %p97
        %p358 = pneg %p121
        %p359 = pneg %p118
        %p360 = pneg %p142
        %p361 = pneg %p139
        %p362 = pneg %p163
        %p363 = pneg %p160
        %p364 = pneg %p184
        %p365 = pneg %p181
        %p366 = pneg %p210
        %p367 = pneg %p207
        %s368 = smul.u32 4, %s22
        %p369 = scmp.lt.s32.totalorder %s368, 7
        %s370 = scalar_select %p369, %s368, 7
        %s371 = smul.addr %s370, 8
        %s372 = scalar_lea.vmem %s7, %s371
        %s373 = smul.u32 4, %s22
        %p374 = scmp.lt.s32.totalorder %s373, 7
        %s375 = scalar_select %p374, %s373, 7
        %s376 = smul.addr %s375, 8
        %s377 = scalar_lea.vmem %s0, %s376
        %s378 = smul.u32 4, %s22
        %s379 = smul.u32 4, %s22
        %s380 = smul.u32 4, %s23
        %s381 = smul.u32 4, %s22
        %p382 = scmp.lt.s32.totalorder %s381, 7
        %s383 = scalar_select %p382, %s381, 7
        %s384 = smul.addr %s383, 8
        %s385 = scalar_lea.vmem %s7, %s384
        %s386 = smul.u32 4, %s22
        %p388 = scmp.eq.s32.totalorder %s23, 0
        // Predicated region
        $region72: #{heter_model_forward.1} parent=66 // pred_check
          %p389 = pneg %p388
        $region73: #{heter_model_forward.1} parent=66 // pred_check_branch
          %391 = sbr.rel (%p389) target = $region75
        $region74: #{heter_model_forward.1} parent=66 // pred_region
          %vm392 = vcmask 261120
          %393 = vst.msk [vmem:[#allocation2] sm:$0xff] %vm392, 0.0
          %394 = vst.msk [vmem:[#allocation2 + $0x8] sm:$0xff] %vm392, 0.0
          %395 = vst.msk [vmem:[#allocation2 + $0x10] sm:$0xff] %vm392, 0.0
          %396 = vst.msk [vmem:[#allocation2 + $0x18] sm:$0xff] %vm392, 0.0
          %397 = vst.msk [vmem:[#allocation2 + $0x20] sm:$0xff] %vm392, 0.0
          %398 = vst.msk [vmem:[#allocation2 + $0x28] sm:$0xff] %vm392, 0.0
          %399 = vst.msk [vmem:[#allocation2 + $0x30] sm:$0xff] %vm392, 0.0
          %400 = vst.msk [vmem:[#allocation2 + $0x38] sm:$0xff] %vm392, 0.0
          %401 = vst.msk [vmem:[#allocation2 + $0x40] sm:$0xff] %vm392, 0.0
          %402 = vst.msk [vmem:[#allocation2 + $0x48] sm:$0xff] %vm392, 0.0
          %403 = vst.msk [vmem:[#allocation2 + $0x50] sm:$0xff] %vm392, 0.0
          %404 = vst.msk [vmem:[#allocation2 + $0x58] sm:$0xff] %vm392, 0.0
        $region75: #{heter_model_forward.1} parent=66 // pred_fallthru
          _
        %s405 = smul.u32 %s23, 512
        %s406 = sshra.s32 %s405, 3
        %s407 = sand.u32 %s405, 7
        %s408 = smul.addr %s406, 4
        %s409 = scalar_lea.vmem %s2, %s408
        %v410 = vld [vmem:[%s409] sm:$0xf]
        %v411 = vld [vmem:[%s409 + $0x4] sm:$0xf]
        %v412 = vld [vmem:[%s409 + $0x8] sm:$0xf]
        %v413 = vld [vmem:[%s409 + $0xc] sm:$0xf]
        %v414 = vld [vmem:[%s409 + $0x10] sm:$0xf]
        %v415 = vld [vmem:[%s409 + $0x14] sm:$0xf]
        %v416 = vld [vmem:[%s409 + $0x18] sm:$0xf]
        %v417 = vld [vmem:[%s409 + $0x1c] sm:$0xf]
        %v418 = vld [vmem:[%s409 + $0x20] sm:$0xf]
        %v419 = vld [vmem:[%s409 + $0x24] sm:$0xf]
        %v420 = vld [vmem:[%s409 + $0x28] sm:$0xf]
        %v421 = vld [vmem:[%s409 + $0x2c] sm:$0xf]
        %v422 = vld [vmem:[%s409 + $0x30] sm:$0xf]
        %v423 = vld [vmem:[%s409 + $0x34] sm:$0xf]
        %v424 = vld [vmem:[%s409 + $0x38] sm:$0xf]
        %v425 = vld [vmem:[%s409 + $0x3c] sm:$0xf]
        %v426 = vld [vmem:[%s409 + $0x40] sm:$0xf]
        %v427 = vld [vmem:[%s409 + $0x44] sm:$0xf]
        %v428 = vld [vmem:[%s409 + $0x48] sm:$0xf]
        %v429 = vld [vmem:[%s409 + $0x4c] sm:$0xf]
        %v430 = vld [vmem:[%s409 + $0x50] sm:$0xf]
        %v431 = vld [vmem:[%s409 + $0x54] sm:$0xf]
        %v432 = vld [vmem:[%s409 + $0x58] sm:$0xf]
        %v433 = vld [vmem:[%s409 + $0x5c] sm:$0xf]
        %v434 = vld [vmem:[%s409 + $0x60] sm:$0xf]
        %v435 = vld [vmem:[%s409 + $0x64] sm:$0xf]
        %v436 = vld [vmem:[%s409 + $0x68] sm:$0xf]
        %v437 = vld [vmem:[%s409 + $0x6c] sm:$0xf]
        %v438 = vld [vmem:[%s409 + $0x70] sm:$0xf]
        %v439 = vld [vmem:[%s409 + $0x74] sm:$0xf]
        %v440 = vld [vmem:[%s409 + $0x78] sm:$0xf]
        %v441 = vld [vmem:[%s409 + $0x7c] sm:$0xf]
        %v442 = vld [vmem:[%s409 + $0x80] sm:$0xf]
        %v443 = vld [vmem:[%s409 + $0x84] sm:$0xf]
        %v444 = vld [vmem:[%s409 + $0x88] sm:$0xf]
        %v445 = vld [vmem:[%s409 + $0x8c] sm:$0xf]
        %v446 = vld [vmem:[%s409 + $0x90] sm:$0xf]
        %v447 = vld [vmem:[%s409 + $0x94] sm:$0xf]
        %v448 = vld [vmem:[%s409 + $0x98] sm:$0xf]
        %v449 = vld [vmem:[%s409 + $0x9c] sm:$0xf]
        %v450 = vld [vmem:[%s409 + $0xa0] sm:$0xf]
        %v451 = vld [vmem:[%s409 + $0xa4] sm:$0xf]
        %v452 = vld [vmem:[%s409 + $0xa8] sm:$0xf]
        %v453 = vld [vmem:[%s409 + $0xac] sm:$0xf]
        %v454 = vld [vmem:[%s409 + $0xb0] sm:$0xf]
        %v455 = vld [vmem:[%s409 + $0xb4] sm:$0xf]
        %v456 = vld [vmem:[%s409 + $0xb8] sm:$0xf]
        %v457 = vld [vmem:[%s409 + $0xbc] sm:$0xf]
        %v458 = vld [vmem:[%s409 + $0xc0] sm:$0xf]
        %v459 = vld [vmem:[%s409 + $0xc4] sm:$0xf]
        %v460 = vld [vmem:[%s409 + $0xc8] sm:$0xf]
        %v461 = vld [vmem:[%s409 + $0xcc] sm:$0xf]
        %v462 = vld [vmem:[%s409 + $0xd0] sm:$0xf]
        %v463 = vld [vmem:[%s409 + $0xd4] sm:$0xf]
        %v464 = vld [vmem:[%s409 + $0xd8] sm:$0xf]
        %v465 = vld [vmem:[%s409 + $0xdc] sm:$0xf]
        %v466 = vld [vmem:[%s409 + $0xe0] sm:$0xf]
        %v467 = vld [vmem:[%s409 + $0xe4] sm:$0xf]
        %v468 = vld [vmem:[%s409 + $0xe8] sm:$0xf]
        %v469 = vld [vmem:[%s409 + $0xec] sm:$0xf]
        %v470 = vld [vmem:[%s409 + $0xf0] sm:$0xf]
        %v471 = vld [vmem:[%s409 + $0xf4] sm:$0xf]
        %v472 = vld [vmem:[%s409 + $0xf8] sm:$0xf]
        %v473 = vld [vmem:[%s409 + $0xfc] sm:$0xf]
        %v474 = vld [vmem:[%s339] sm:$0xff]
        %v475 = vld [vmem:[%s339 + $0x8] sm:$0xff]
        %v476 = vld [vmem:[%s339 + $0x10] sm:$0xff]
        %v477 = vld [vmem:[%s339 + $0x18] sm:$0xff]
        %v478 = vld [vmem:[%s339 + $0x20] sm:$0xff]
        %v479 = vld [vmem:[%s339 + $0x28] sm:$0xff]
        %v480 = vld [vmem:[%s339 + $0x30] sm:$0xff]
        %v481 = vld [vmem:[%s339 + $0x38] sm:$0xff]
        %v482 = vld [vmem:[%s339 + $0x40] sm:$0xff]
        %v483 = vld [vmem:[%s339 + $0x48] sm:$0xff]
        %v484 = vld [vmem:[%s339 + $0x50] sm:$0xff]
        %v485 = vld [vmem:[%s339 + $0x58] sm:$0xff]
        %v486 = vld [vmem:[%s339 + $0x60] sm:$0xff]
        %v487 = vld [vmem:[%s339 + $0x68] sm:$0xff]
        %v488 = vld [vmem:[%s339 + $0x70] sm:$0xff]
        %v489 = vld [vmem:[%s339 + $0x78] sm:$0xff]
        %v490 = vld [vmem:[%s339 + $0x80] sm:$0xff]
        %v491 = vld [vmem:[%s339 + $0x88] sm:$0xff]
        %v492 = vld [vmem:[%s339 + $0x90] sm:$0xff]
        %v493 = vld [vmem:[%s339 + $0x98] sm:$0xff]
        %v494 = vld [vmem:[%s339 + $0xa0] sm:$0xff]
        %v495 = vld [vmem:[%s339 + $0xa8] sm:$0xff]
        %v496 = vld [vmem:[%s339 + $0xb0] sm:$0xff]
        %v497 = vld [vmem:[%s339 + $0xb8] sm:$0xff]
        %v498 = vld [vmem:[#allocation2] sm:$0xff]
        %v499 = vld [vmem:[#allocation2 + $0x8] sm:$0xff]
        %v500 = vld [vmem:[#allocation2 + $0x10] sm:$0xff]
        %v501 = vld [vmem:[#allocation2 + $0x18] sm:$0xff]
        %v502 = vld [vmem:[#allocation2 + $0x20] sm:$0xff]
        %v503 = vld [vmem:[#allocation2 + $0x28] sm:$0xff]
        %v504 = vld [vmem:[#allocation2 + $0x30] sm:$0xff]
        %v505 = vld [vmem:[#allocation2 + $0x38] sm:$0xff]
        %v506 = vld [vmem:[#allocation2 + $0x40] sm:$0xff]
        %v507 = vld [vmem:[#allocation2 + $0x48] sm:$0xff]
        %v508 = vld [vmem:[#allocation2 + $0x50] sm:$0xff]
        %v509 = vld [vmem:[#allocation2 + $0x58] sm:$0xff]
        %v534 = vunpack.c.l.b16 %v474
        %v535 = vunpack.c.h.b16 %v474
        %v536 = vunpack.c.l.b16 %v475
        %v537 = vunpack.c.h.b16 %v475
        %v538 = vunpack.c.l.b16 %v476
        %v539 = vunpack.c.h.b16 %v476
        %v540 = vunpack.c.l.b16 %v477
        %v541 = vunpack.c.h.b16 %v477
        %v542 = vunpack.c.l.b16 %v478
        %v543 = vunpack.c.h.b16 %v478
        %v544 = vunpack.c.l.b16 %v479
        %v545 = vunpack.c.h.b16 %v479
        %v546 = vunpack.c.l.b16 %v480
        %v547 = vunpack.c.h.b16 %v480
        %v548 = vunpack.c.l.b16 %v481
        %v549 = vunpack.c.h.b16 %v481
        %v550 = vunpack.c.l.b16 %v482
        %v551 = vunpack.c.h.b16 %v482
        %v552 = vunpack.c.l.b16 %v483
        %v553 = vunpack.c.h.b16 %v483
        %v554 = vunpack.c.l.b16 %v484
        %v555 = vunpack.c.h.b16 %v484
        %v556 = vunpack.c.l.b16 %v485
        %v557 = vunpack.c.h.b16 %v485
        %v558 = vunpack.c.l.b16 %v486
        %v559 = vunpack.c.h.b16 %v486
        %v560 = vunpack.c.l.b16 %v487
        %v561 = vunpack.c.h.b16 %v487
        %v562 = vunpack.c.l.b16 %v488
        %v563 = vunpack.c.h.b16 %v488
        %v564 = vunpack.c.l.b16 %v489
        %v565 = vunpack.c.h.b16 %v489
        %v566 = vunpack.c.l.b16 %v490
        %v567 = vunpack.c.h.b16 %v490
        %v568 = vunpack.c.l.b16 %v491
        %v569 = vunpack.c.h.b16 %v491
        %v570 = vunpack.c.l.b16 %v492
        %v571 = vunpack.c.h.b16 %v492
        %v572 = vunpack.c.l.b16 %v493
        %v573 = vunpack.c.h.b16 %v493
        %v574 = vunpack.c.l.b16 %v494
        %v575 = vunpack.c.h.b16 %v494
        %v576 = vunpack.c.l.b16 %v495
        %v577 = vunpack.c.h.b16 %v495
        %v578 = vunpack.c.l.b16 %v496
        %v579 = vunpack.c.h.b16 %v496
        %v580 = vunpack.c.l.b16 %v497
        %v581 = vunpack.c.h.b16 %v497
        %v582 = vpack.c.b16 %v538, %v534
        %v583 = vpack.c.b16 %v539, %v535
        %v584 = vpack.c.b16 %v540, %v536
        %v585 = vpack.c.b16 %v541, %v537
        %v586 = vpack.c.b16 %v546, %v542
        %v587 = vpack.c.b16 %v547, %v543
        %v588 = vpack.c.b16 %v548, %v544
        %v589 = vpack.c.b16 %v549, %v545
        %v590 = vpack.c.b16 %v554, %v550
        %v591 = vpack.c.b16 %v555, %v551
        %v592 = vpack.c.b16 %v556, %v552
        %v593 = vpack.c.b16 %v557, %v553
        %v594 = vpack.c.b16 %v562, %v558
        %v595 = vpack.c.b16 %v563, %v559
        %v596 = vpack.c.b16 %v564, %v560
        %v597 = vpack.c.b16 %v565, %v561
        %v598 = vpack.c.b16 %v570, %v566
        %v599 = vpack.c.b16 %v571, %v567
        %v600 = vpack.c.b16 %v572, %v568
        %v601 = vpack.c.b16 %v573, %v569
        %v602 = vpack.c.b16 %v578, %v574
        %v603 = vpack.c.b16 %v579, %v575
        %v604 = vpack.c.b16 %v580, %v576
        %v605 = vpack.c.b16 %v581, %v577
        %v694 = vunpack.c.l.b16 %v410
        %v695 = vunpack.c.l.b16 %v411
        %v696 = vunpack.c.l.b16 %v412
        %v697 = vunpack.c.l.b16 %v413
        %v698 = vunpack.c.l.b16 %v414
        %v699 = vunpack.c.l.b16 %v415
        %v700 = vunpack.c.l.b16 %v416
        %v701 = vunpack.c.l.b16 %v417
        %v702 = vunpack.c.l.b16 %v418
        %v703 = vunpack.c.l.b16 %v419
        %v704 = vunpack.c.l.b16 %v420
        %v705 = vunpack.c.l.b16 %v421
        %v706 = vunpack.c.l.b16 %v422
        %v707 = vunpack.c.l.b16 %v423
        %v708 = vunpack.c.l.b16 %v424
        %v709 = vunpack.c.l.b16 %v425
        %v710 = vunpack.c.l.b16 %v426
        %v711 = vunpack.c.l.b16 %v427
        %v712 = vunpack.c.l.b16 %v428
        %v713 = vunpack.c.l.b16 %v429
        %v714 = vunpack.c.l.b16 %v430
        %v715 = vunpack.c.l.b16 %v431
        %v716 = vunpack.c.l.b16 %v432
        %v717 = vunpack.c.l.b16 %v433
        %v718 = vunpack.c.l.b16 %v434
        %v719 = vunpack.c.l.b16 %v435
        %v720 = vunpack.c.l.b16 %v436
        %v721 = vunpack.c.l.b16 %v437
        %v722 = vunpack.c.l.b16 %v438
        %v723 = vunpack.c.l.b16 %v439
        %v724 = vunpack.c.l.b16 %v440
        %v725 = vunpack.c.l.b16 %v441
        %v726 = vunpack.c.l.b16 %v442
        %v727 = vunpack.c.l.b16 %v443
        %v728 = vunpack.c.l.b16 %v444
        %v729 = vunpack.c.l.b16 %v445
        %v730 = vunpack.c.l.b16 %v446
        %v731 = vunpack.c.l.b16 %v447
        %v732 = vunpack.c.l.b16 %v448
        %v733 = vunpack.c.l.b16 %v449
        %v734 = vunpack.c.l.b16 %v450
        %v735 = vunpack.c.l.b16 %v451
        %v736 = vunpack.c.l.b16 %v452
        %v737 = vunpack.c.l.b16 %v453
        %v738 = vunpack.c.l.b16 %v454
        %v739 = vunpack.c.l.b16 %v455
        %v740 = vunpack.c.l.b16 %v456
        %v741 = vunpack.c.l.b16 %v457
        %v742 = vunpack.c.l.b16 %v458
        %v743 = vunpack.c.l.b16 %v459
        %v744 = vunpack.c.l.b16 %v460
        %v745 = vunpack.c.l.b16 %v461
        %v746 = vunpack.c.l.b16 %v462
        %v747 = vunpack.c.l.b16 %v463
        %v748 = vunpack.c.l.b16 %v464
        %v749 = vunpack.c.l.b16 %v465
        %v750 = vunpack.c.l.b16 %v466
        %v751 = vunpack.c.l.b16 %v467
        %v752 = vunpack.c.l.b16 %v468
        %v753 = vunpack.c.l.b16 %v469
        %v754 = vunpack.c.l.b16 %v470
        %v755 = vunpack.c.l.b16 %v471
        %v756 = vunpack.c.l.b16 %v472
        %v757 = vunpack.c.l.b16 %v473
        %v758 = vpack.c.b16 %v695, %v694
        %v759 = vpack.c.b16 %v697, %v696
        %v760 = vpack.c.b16 %v699, %v698
        %v761 = vpack.c.b16 %v701, %v700
        %v762 = vpack.c.b16 %v703, %v702
        %v763 = vpack.c.b16 %v705, %v704
        %v764 = vpack.c.b16 %v707, %v706
        %v765 = vpack.c.b16 %v709, %v708
        %v766 = vpack.c.b16 %v711, %v710
        %v767 = vpack.c.b16 %v713, %v712
        %v768 = vpack.c.b16 %v715, %v714
        %v769 = vpack.c.b16 %v717, %v716
        %v770 = vpack.c.b16 %v719, %v718
        %v771 = vpack.c.b16 %v721, %v720
        %v772 = vpack.c.b16 %v723, %v722
        %v773 = vpack.c.b16 %v725, %v724
        %v774 = vpack.c.b16 %v727, %v726
        %v775 = vpack.c.b16 %v729, %v728
        %v776 = vpack.c.b16 %v731, %v730
        %v777 = vpack.c.b16 %v733, %v732
        %v778 = vpack.c.b16 %v735, %v734
        %v779 = vpack.c.b16 %v737, %v736
        %v780 = vpack.c.b16 %v739, %v738
        %v781 = vpack.c.b16 %v741, %v740
        %v782 = vpack.c.b16 %v743, %v742
        %v783 = vpack.c.b16 %v745, %v744
        %v784 = vpack.c.b16 %v747, %v746
        %v785 = vpack.c.b16 %v749, %v748
        %v786 = vpack.c.b16 %v751, %v750
        %v787 = vpack.c.b16 %v753, %v752
        %v788 = vpack.c.b16 %v755, %v754
        %v789 = vpack.c.b16 %v757, %v756
        %822 = vmatprep.subr.bf16.mxu0 0
        %823 = vmatpush1.bf16.msra.mxu0 %v758
        %824 = vmatprep.subr.bf16.mxu0 0
        %825 = vmatpush1.bf16.msra.mxu0 %v759
        %826 = vmatprep.subr.bf16.mxu0 0
        %827 = vmatpush1.bf16.msra.mxu0 %v760
        %828 = vmatprep.subr.bf16.mxu0 0
        %829 = vmatpush1.bf16.msra.mxu0 %v761
        %830 = vmatprep.subr.bf16.mxu0 0
        %831 = vmatpush1.bf16.msra.mxu0 %v762
        %832 = vmatprep.subr.bf16.mxu0 0
        %833 = vmatpush1.bf16.msra.mxu0 %v763
        %834 = vmatprep.subr.bf16.mxu0 0
        %835 = vmatpush1.bf16.msra.mxu0 %v764
        %836 = vmatprep.subr.bf16.mxu0 0
        %837 = vmatpush1.bf16.msra.mxu0 %v765
        %838 = vmatprep.subr.bf16.mxu0 0
        %839 = vmatpush1.bf16.msra.mxu0 %v766
        %840 = vmatprep.subr.bf16.mxu0 0
        %841 = vmatpush1.bf16.msra.mxu0 %v767
        %842 = vmatprep.subr.bf16.mxu0 0
        %843 = vmatpush1.bf16.msra.mxu0 %v768
        %844 = vmatprep.subr.bf16.mxu0 0
        %845 = vmatpush1.bf16.msra.mxu0 %v769
        %846 = vmatprep.subr.bf16.mxu0 0
        %847 = vmatpush1.bf16.msra.mxu0 %v770
        %848 = vmatprep.subr.bf16.mxu0 0
        %849 = vmatpush1.bf16.msra.mxu0 %v771
        %850 = vmatprep.subr.bf16.mxu0 0
        %851 = vmatpush1.bf16.msra.mxu0 %v772
        %852 = vmatprep.subr.bf16.mxu0 0
        %853 = vmatpush1.bf16.msra.mxu0 %v773
        %854 = vmatprep.mubr.bf16.mxu0 %v583
        %855 = vmatmul.mubr.bf16.gmra.mrb[0].mxu0 %v582
        %v856 = vpop.f32.mrb[0].mxu0
        %v857 = vadd.f32 0.0, %v856
        %v858 = vpop.f32.mrb[0].mxu0
        %v859 = vpop.f32.mrb[0].mxu0
        %v860 = vadd.f32 0.0, %v859
        %v861 = vpop.f32.mrb[0].mxu0
        %862 = vmatprep.mubr.bf16.mxu0 %v587
        %863 = vmatmul.mubr.bf16.gmra.mrb[0].mxu0 %v586
        %v864 = vpop.f32.mrb[0].mxu0
        %v865 = vadd.f32 0.0, %v864
        %v866 = vpop.f32.mrb[0].mxu0
        %v867 = vpop.f32.mrb[0].mxu0
        %v868 = vadd.f32 0.0, %v867
        %v869 = vpop.f32.mrb[0].mxu0
        %870 = vmatprep.mubr.bf16.mxu0 %v591
        %871 = vmatmul.mubr.bf16.gmra.mrb[0].mxu0 %v590
        %v872 = vpop.f32.mrb[0].mxu0
        %v873 = vadd.f32 0.0, %v872
        %v874 = vpop.f32.mrb[0].mxu0
        %v875 = vpop.f32.mrb[0].mxu0
        %v876 = vadd.f32 0.0, %v875
        %v877 = vpop.f32.mrb[0].mxu0
        %878 = vmatprep.mubr.bf16.mxu0 %v595
        %879 = vmatmul.mubr.bf16.gmra.mrb[0].mxu0 %v594
        %v880 = vpop.f32.mrb[0].mxu0
        %v881 = vadd.f32 0.0, %v880
        %v882 = vpop.f32.mrb[0].mxu0
        %v883 = vpop.f32.mrb[0].mxu0
        %v884 = vadd.f32 0.0, %v883
        %v885 = vpop.f32.mrb[0].mxu0
        %886 = vmatprep.mubr.bf16.mxu0 %v599
        %887 = vmatmul.mubr.bf16.gmra.mrb[0].mxu0 %v598
        %v888 = vpop.f32.mrb[0].mxu0
        %v889 = vadd.f32 0.0, %v888
        %v890 = vpop.f32.mrb[0].mxu0
        %v891 = vpop.f32.mrb[0].mxu0
        %v892 = vadd.f32 0.0, %v891
        %v893 = vpop.f32.mrb[0].mxu0
        %894 = vmatprep.mubr.bf16.mxu0 %v603
        %895 = vmatmul.mubr.bf16.gmra.mrb[0].mxu0 %v602
        %v896 = vpop.f32.mrb[0].mxu0
        %v897 = vadd.f32 0.0, %v896
        %v898 = vpop.f32.mrb[0].mxu0
        %v899 = vpop.f32.mrb[0].mxu0
        %v900 = vadd.f32 0.0, %v899
        %v901 = vpop.f32.mrb[0].mxu0
        %902 = vdwg.mxu0
        %903 = vmatprep.subr.bf16.mxu0 0
        %904 = vmatpush1.bf16.msra.mxu0 %v774
        %905 = vmatprep.subr.bf16.mxu0 0
        %906 = vmatpush1.bf16.msra.mxu0 %v775
        %907 = vmatprep.subr.bf16.mxu0 0
        %908 = vmatpush1.bf16.msra.mxu0 %v776
        %909 = vmatprep.subr.bf16.mxu0 0
        %910 = vmatpush1.bf16.msra.mxu0 %v777
        %911 = vmatprep.subr.bf16.mxu0 0
        %912 = vmatpush1.bf16.msra.mxu0 %v778
        %913 = vmatprep.subr.bf16.mxu0 0
        %914 = vmatpush1.bf16.msra.mxu0 %v779
        %915 = vmatprep.subr.bf16.mxu0 0
        %916 = vmatpush1.bf16.msra.mxu0 %v780
        %917 = vmatprep.subr.bf16.mxu0 0
        %918 = vmatpush1.bf16.msra.mxu0 %v781
        %919 = vmatprep.subr.bf16.mxu0 0
        %920 = vmatpush1.bf16.msra.mxu0 %v782
        %921 = vmatprep.subr.bf16.mxu0 0
        %922 = vmatpush1.bf16.msra.mxu0 %v783
        %923 = vmatprep.subr.bf16.mxu0 0
        %924 = vmatpush1.bf16.msra.mxu0 %v784
        %925 = vmatprep.subr.bf16.mxu0 0
        %926 = vmatpush1.bf16.msra.mxu0 %v785
        %927 = vmatprep.subr.bf16.mxu0 0
        %928 = vmatpush1.bf16.msra.mxu0 %v786
        %929 = vmatprep.subr.bf16.mxu0 0
        %930 = vmatpush1.bf16.msra.mxu0 %v787
        %931 = vmatprep.subr.bf16.mxu0 0
        %932 = vmatpush1.bf16.msra.mxu0 %v788
        %933 = vmatprep.subr.bf16.mxu0 0
        %934 = vmatpush1.bf16.msra.mxu0 %v789
        %935 = vmatprep.mubr.bf16.mxu0 %v585
        %936 = vmatmul.mubr.bf16.gmra.mrb[0].mxu0 %v584
        %v937 = vpop.f32.mrb[0].mxu0
        %v938 = vadd.f32 %v857, %v937
        %v939 = vpop.f32.mrb[0].mxu0
        %v940 = vpop.f32.mrb[0].mxu0
        %v941 = vadd.f32 %v860, %v940
        %v942 = vpop.f32.mrb[0].mxu0
        %943 = vmatprep.mubr.bf16.mxu0 %v589
        %944 = vmatmul.mubr.bf16.gmra.mrb[0].mxu0 %v588
        %v945 = vpop.f32.mrb[0].mxu0
        %v946 = vadd.f32 %v865, %v945
        %v947 = vpop.f32.mrb[0].mxu0
        %v948 = vpop.f32.mrb[0].mxu0
        %v949 = vadd.f32 %v868, %v948
        %v950 = vpop.f32.mrb[0].mxu0
        %951 = vmatprep.mubr.bf16.mxu0 %v593
        %952 = vmatmul.mubr.bf16.gmra.mrb[0].mxu0 %v592
        %v953 = vpop.f32.mrb[0].mxu0
        %v954 = vadd.f32 %v873, %v953
        %v955 = vpop.f32.mrb[0].mxu0
        %v956 = vpop.f32.mrb[0].mxu0
        %v957 = vadd.f32 %v876, %v956
        %v958 = vpop.f32.mrb[0].mxu0
        %959 = vmatprep.mubr.bf16.mxu0 %v597
        %960 = vmatmul.mubr.bf16.gmra.mrb[0].mxu0 %v596
        %v961 = vpop.f32.mrb[0].mxu0
        %v962 = vadd.f32 %v881, %v961
        %v963 = vpop.f32.mrb[0].mxu0
        %v964 = vpop.f32.mrb[0].mxu0
        %v965 = vadd.f32 %v884, %v964
        %v966 = vpop.f32.mrb[0].mxu0
        %967 = vmatprep.mubr.bf16.mxu0 %v601
        %968 = vmatmul.mubr.bf16.gmra.mrb[0].mxu0 %v600
        %v969 = vpop.f32.mrb[0].mxu0
        %v970 = vadd.f32 %v889, %v969
        %v971 = vpop.f32.mrb[0].mxu0
        %v972 = vpop.f32.mrb[0].mxu0
        %v973 = vadd.f32 %v892, %v972
        %v974 = vpop.f32.mrb[0].mxu0
        %975 = vmatprep.mubr.bf16.mxu0 %v605
        %976 = vmatmul.mubr.bf16.gmra.mrb[0].mxu0 %v604
        %v977 = vpop.f32.mrb[0].mxu0
        %v978 = vadd.f32 %v897, %v977
        %v979 = vpop.f32.mrb[0].mxu0
        %v980 = vpop.f32.mrb[0].mxu0
        %v981 = vadd.f32 %v900, %v980
        %v982 = vpop.f32.mrb[0].mxu0
        %983 = vdwg.mxu0
        %v984 = vadd.f32 %v498, %v938
        %v985 = vadd.f32 %v499, %v941
        %v986 = vadd.f32 %v500, %v946
        %v987 = vadd.f32 %v501, %v949
        %v988 = vadd.f32 %v502, %v954
        %v989 = vadd.f32 %v503, %v957
        %v990 = vadd.f32 %v504, %v962
        %v991 = vadd.f32 %v505, %v965
        %v992 = vadd.f32 %v506, %v970
        %v993 = vadd.f32 %v507, %v973
        %v994 = vadd.f32 %v508, %v978
        %v995 = vadd.f32 %v509, %v981
        %vm996 = vcmask 261120
        %997 = vst.msk [vmem:[#allocation2] sm:$0xff] %vm996, %v984
        %998 = vst.msk [vmem:[#allocation2 + $0x8] sm:$0xff] %vm996, %v985
        %999 = vst.msk [vmem:[#allocation2 + $0x10] sm:$0xff] %vm996, %v986
        %1000 = vst.msk [vmem:[#allocation2 + $0x18] sm:$0xff] %vm996, %v987
        %1001 = vst.msk [vmem:[#allocation2 + $0x20] sm:$0xff] %vm996, %v988
        %1002 = vst.msk [vmem:[#allocation2 + $0x28] sm:$0xff] %vm996, %v989
        %1003 = vst.msk [vmem:[#allocation2 + $0x30] sm:$0xff] %vm996, %v990
        %1004 = vst.msk [vmem:[#allocation2 + $0x38] sm:$0xff] %vm996, %v991
        %1005 = vst.msk [vmem:[#allocation2 + $0x40] sm:$0xff] %vm996, %v992
        %1006 = vst.msk [vmem:[#allocation2 + $0x48] sm:$0xff] %vm996, %v993
        %1007 = vst.msk [vmem:[#allocation2 + $0x50] sm:$0xff] %vm996, %v994
        %1008 = vst.msk [vmem:[#allocation2 + $0x58] sm:$0xff] %vm996, %v995
        // Predicated region
        $region76: #{heter_model_forward.1} parent=66 // pred_check
          %p1009 = pneg %p388
        $region77: #{heter_model_forward.1} parent=66 // pred_check_branch
          %1011 = sbr.rel (%p1009) target = $region79
        $region78: #{heter_model_forward.1} parent=66 // pred_region
          %v1012 = vld [vmem:[#allocation2] sm:$0xff]
          %v1013 = vld [vmem:[#allocation2 + $0x8] sm:$0xff]
          %v1014 = vld [vmem:[#allocation2 + $0x10] sm:$0xff]
          %v1015 = vld [vmem:[#allocation2 + $0x18] sm:$0xff]
          %v1016 = vld [vmem:[#allocation2 + $0x20] sm:$0xff]
          %v1017 = vld [vmem:[#allocation2 + $0x28] sm:$0xff]
          %v1018 = vld [vmem:[#allocation2 + $0x30] sm:$0xff]
          %v1019 = vld [vmem:[#allocation2 + $0x38] sm:$0xff]
          %v1020 = vld [vmem:[#allocation2 + $0x40] sm:$0xff]
          %v1021 = vld [vmem:[#allocation2 + $0x48] sm:$0xff]
          %v1022 = vld [vmem:[#allocation2 + $0x50] sm:$0xff]
          %v1023 = vld [vmem:[#allocation2 + $0x58] sm:$0xff]
          %v1024 = vmul.f32 %v1012, %v1012
          %v1025 = vmul.f32 %v1013, %v1013
          %v1026 = vmul.f32 %v1014, %v1014
          %v1027 = vmul.f32 %v1015, %v1015
          %v1028 = vmul.f32 %v1016, %v1016
          %v1029 = vmul.f32 %v1017, %v1017
          %v1030 = vmul.f32 %v1018, %v1018
          %v1031 = vmul.f32 %v1019, %v1019
          %v1032 = vmul.f32 %v1020, %v1020
          %v1033 = vmul.f32 %v1021, %v1021
          %v1034 = vmul.f32 %v1022, %v1022
          %v1035 = vmul.f32 %v1023, %v1023
          %v1036 = vsel %vm996, %v1024, 0.0
          %1037 = vadd.xlane.f32.xlu0 %v1036
          %v1038 = vpop.xlane.xlu0 %1037
          %v1039 = vsel %vm996, %v1025, 0.0
          %1040 = vadd.xlane.f32.xlu0 %v1039
          %v1041 = vpop.xlane.xlu0 %1040
          %v1042 = vsel %vm996, %v1026, 0.0
          %1043 = vadd.xlane.f32.xlu0 %v1042
          %v1044 = vpop.xlane.xlu0 %1043
          %v1045 = vsel %vm996, %v1027, 0.0
          %1046 = vadd.xlane.f32.xlu0 %v1045
          %v1047 = vpop.xlane.xlu0 %1046
          %v1048 = vsel %vm996, %v1028, 0.0
          %1049 = vadd.xlane.f32.xlu0 %v1048
          %v1050 = vpop.xlane.xlu0 %1049
          %v1051 = vsel %vm996, %v1029, 0.0
          %1052 = vadd.xlane.f32.xlu0 %v1051
          %v1053 = vpop.xlane.xlu0 %1052
          %v1054 = vsel %vm996, %v1030, 0.0
          %1055 = vadd.xlane.f32.xlu0 %v1054
          %v1056 = vpop.xlane.xlu0 %1055
          %v1057 = vsel %vm996, %v1031, 0.0
          %1058 = vadd.xlane.f32.xlu0 %v1057
          %v1059 = vpop.xlane.xlu0 %1058
          %v1060 = vsel %vm996, %v1032, 0.0
          %1061 = vadd.xlane.f32.xlu0 %v1060
          %v1062 = vpop.xlane.xlu0 %1061
          %v1063 = vsel %vm996, %v1033, 0.0
          %1064 = vadd.xlane.f32.xlu0 %v1063
          %v1065 = vpop.xlane.xlu0 %1064
          %v1066 = vsel %vm996, %v1034, 0.0
          %1067 = vadd.xlane.f32.xlu0 %v1066
          %v1068 = vpop.xlane.xlu0 %1067
          %v1069 = vsel %vm996, %v1035, 0.0
          %1070 = vadd.xlane.f32.xlu0 %v1069
          %v1071 = vpop.xlane.xlu0 %1070
          %v1072 = vmax.f32 %v1038, 1e-24
          %v1073 = vmax.f32 %v1041, 1e-24
          %v1074 = vmax.f32 %v1044, 1e-24
          %v1075 = vmax.f32 %v1047, 1e-24
          %v1076 = vmax.f32 %v1050, 1e-24
          %v1077 = vmax.f32 %v1053, 1e-24
          %v1078 = vmax.f32 %v1056, 1e-24
          %v1079 = vmax.f32 %v1059, 1e-24
          %v1080 = vmax.f32 %v1062, 1e-24
          %v1081 = vmax.f32 %v1065, 1e-24
          %v1082 = vmax.f32 %v1068, 1e-24
          %v1083 = vmax.f32 %v1071, 1e-24
          %v1084 = vrsqrt.pop %v1072
          %v1085 = vrsqrt.pop %v1073
          %v1086 = vrsqrt.pop %v1074
          %v1087 = vrsqrt.pop %v1075
          %v1088 = vrsqrt.pop %v1076
          %v1089 = vrsqrt.pop %v1077
          %v1090 = vrsqrt.pop %v1078
          %v1091 = vrsqrt.pop %v1079
          %v1092 = vrsqrt.pop %v1080
          %v1093 = vrsqrt.pop %v1081
          %v1094 = vrsqrt.pop %v1082
          %v1095 = vrsqrt.pop %v1083
          %v1096 = vmul.f32 %v1012, %v1084
          %v1097 = vmul.f32 %v1013, %v1085
          %v1098 = vmul.f32 %v1014, %v1086
          %v1099 = vmul.f32 %v1015, %v1087
          %v1100 = vmul.f32 %v1016, %v1088
          %v1101 = vmul.f32 %v1017, %v1089
          %v1102 = vmul.f32 %v1018, %v1090
          %v1103 = vmul.f32 %v1019, %v1091
          %v1104 = vmul.f32 %v1020, %v1092
          %v1105 = vmul.f32 %v1021, %v1093
          %v1106 = vmul.f32 %v1022, %v1094
          %v1107 = vmul.f32 %v1023, %v1095
          %v1108 = vld [vmem:[%s377] sm:$0xff]
          %v1109 = vld [vmem:[%s377 + $0x8] sm:$0xff]
          %v1110 = vld [vmem:[%s377 + $0x10] sm:$0xff]
          %v1111 = vld [vmem:[%s377 + $0x18] sm:$0xff]
          %v1112 = vmul.f32 %v1108, %v1108
          %v1113 = vmul.f32 %v1109, %v1109
          %v1114 = vmul.f32 %v1110, %v1110
          %v1115 = vmul.f32 %v1111, %v1111
          %v1116 = vsel %vm996, %v1112, 0.0
          %1117 = vadd.xlane.f32.xlu0 %v1116
          %v1118 = vpop.xlane.xlu0 %1117
          %v1119 = vsel %vm996, %v1113, 0.0
          %1120 = vadd.xlane.f32.xlu0 %v1119
          %v1121 = vpop.xlane.xlu0 %1120
          %v1122 = vsel %vm996, %v1114, 0.0
          %1123 = vadd.xlane.f32.xlu0 %v1122
          %v1124 = vpop.xlane.xlu0 %1123
          %v1125 = vsel %vm996, %v1115, 0.0
          %1126 = vadd.xlane.f32.xlu0 %v1125
          %v1127 = vpop.xlane.xlu0 %1126
          %v1128 = vmax.f32 %v1118, 1e-24
          %v1129 = vmax.f32 %v1121, 1e-24
          %v1130 = vmax.f32 %v1124, 1e-24
          %v1131 = vmax.f32 %v1127, 1e-24
          %v1132 = vrsqrt.pop %v1128
          %v1133 = vrsqrt.pop %v1129
          %v1134 = vrsqrt.pop %v1130
          %v1135 = vrsqrt.pop %v1131
          %v1136 = vmul.f32 %v1108, %v1132
          %v1137 = vmul.f32 %v1109, %v1133
          %v1138 = vmul.f32 %v1110, %v1134
          %v1139 = vmul.f32 %v1111, %v1135
          %v1140 = vadd.f32 %v1136, %v1096
          %v1141 = vadd.f32 %v1137, %v1097
          %v1142 = vadd.f32 %v1138, %v1098
          %v1143 = vadd.f32 %v1139, %v1099
          %v1144 = vadd.f32 %v1140, %v1100
          %v1145 = vadd.f32 %v1141, %v1101
          %v1146 = vadd.f32 %v1142, %v1102
          %v1147 = vadd.f32 %v1143, %v1103
          %v1148 = vadd.f32 %v1144, %v1104
          %v1149 = vadd.f32 %v1145, %v1105
          %v1150 = vadd.f32 %v1146, %v1106
          %v1151 = vadd.f32 %v1147, %v1107
          %v1152 = vmul.f32 %v1148, 0.25
          %v1153 = vmul.f32 %v1149, 0.25
          %v1154 = vmul.f32 %v1150, 0.25
          %v1155 = vmul.f32 %v1151, 0.25
          %v1156 = vld [vmem:[%s3] sm:$0xff]
          %v1157 = vld [vmem:[%s3 + $0x8] sm:$0xff]
          %v1158 = vld [vmem:[%s3 + $0x10] sm:$0xff]
          %v1159 = vld [vmem:[%s3 + $0x18] sm:$0xff]
          %v1160 = vld [vmem:[%s4] sm:$0x1]
          %v1162 = vlaneseq
          %v1163 = vshrl.u32 %v1162, 7
          %v1164 = vsub.s32 0, %v1163
          %v1165 = vrot.slane %v1160, %v1164
          %v1168 = vsel %vm996, %v1152, 0
          %v1171 = vsel %vm996, %v1153, 0
          %v1174 = vsel %vm996, %v1154, 0
          %v1177 = vsel %vm996, %v1155, 0
          %1179 = vmatprep.subr.mxu0 0.0
          %1180 = vmatpush1.msra.mxu0 %v1156
          %1181 = vmatprep.subr.mxu0 0.0
          %1182 = vmatpush1.msra.mxu0 %v1157
          %1183 = vmatprep.subr.mxu0 0.0
          %1184 = vmatpush1.msra.mxu0 %v1158
          %1185 = vmatprep.subr.mxu0 0.0
          %1186 = vmatpush1.msra.mxu0 %v1159
          %1187 = vmatprep.subr.mxu0 0.0
          %1188 = vmatpush1.msra.mxu0 0.0
          %1189 = vmatprep.subr.mxu0 0.0
          %1190 = vmatpush1.msra.mxu0 0.0
          %1191 = vmatprep.subr.mxu0 0.0
          %1192 = vmatpush1.msra.mxu0 0.0
          %1193 = vmatprep.subr.mxu0 0.0
          %1194 = vmatpush1.msra.mxu0 0.0
          %1195 = vmatprep.subr.mxu0 0.0
          %1196 = vmatpush1.msra.mxu0 0.0
          %1197 = vmatprep.subr.mxu0 0.0
          %1198 = vmatpush1.msra.mxu0 0.0
          %1199 = vmatprep.subr.mxu0 0.0
          %1200 = vmatpush1.msra.mxu0 0.0
          %1201 = vmatprep.subr.mxu0 0.0
          %1202 = vmatpush1.msra.mxu0 0.0
          %1203 = vmatprep.subr.mxu0 0.0
          %1204 = vmatpush1.msra.mxu0 0.0
          %1205 = vmatprep.subr.mxu0 0.0
          %1206 = vmatpush1.msra.mxu0 0.0
          %1207 = vmatprep.subr.mxu0 0.0
          %1208 = vmatpush1.msra.mxu0 0.0
          %1209 = vmatprep.subr.mxu0 0.0
          %1210 = vmatpush1.msra.mxu0 0.0
          %1211 = vmatprep.subr.mxu0 0.0
          %1212 = vmatpush1.msra.mxu0 0.0
          %1213 = vmatprep.subr.mxu0 0.0
          %1214 = vmatpush1.msra.mxu0 0.0
          %1215 = vmatprep.subr.mxu0 0.0
          %1216 = vmatpush1.msra.mxu0 0.0
          %1217 = vmatprep.subr.mxu0 0.0
          %1218 = vmatpush1.msra.mxu0 0.0
          %1219 = vmatprep.subr.mxu0 0.0
          %1220 = vmatpush1.msra.mxu0 0.0
          %1221 = vmatprep.subr.mxu0 0.0
          %1222 = vmatpush1.msra.mxu0 0.0
          %1223 = vmatprep.subr.mxu0 0.0
          %1224 = vmatpush1.msra.mxu0 0.0
          %1225 = vmatprep.subr.mxu0 0.0
          %1226 = vmatpush1.msra.mxu0 0.0
          %1227 = vmatprep.subr.mxu0 0.0
          %1228 = vmatpush1.msra.mxu0 0.0
          %1229 = vmatprep.subr.mxu0 0.0
          %1230 = vmatpush1.msra.mxu0 0.0
          %1231 = vmatprep.subr.mxu0 0.0
          %1232 = vmatpush1.msra.mxu0 0.0
          %1233 = vmatprep.subr.mxu0 0.0
          %1234 = vmatpush1.msra.mxu0 0.0
          %1235 = vmatprep.subr.mxu0 0.0
          %1236 = vmatpush1.msra.mxu0 0.0
          %1237 = vmatprep.subr.mxu0 0.0
          %1238 = vmatpush1.msra.mxu0 0.0
          %1239 = vmatprep.subr.mxu0 0.0
          %1240 = vmatpush1.msra.mxu0 0.0
          %1241 = vmatprep.subr.mxu0 0.0
          %1242 = vmatpush1.msra.mxu0 0.0
          %1243 = vmatprep.mubr.f32.mxu0 0.0
          %1244 = vmatmul.mubr.f32.gmra.mrb[0].mxu0 %v1168
          %v1245 = vpop.f32.mrb[0].mxu0
          %v1246 = vadd.f32 %v1165, %v1245
          %v1247 = vpop.f32.mrb[0].mxu0
          %1248 = vmatprep.mubr.f32.mxu0 0.0
          %1249 = vmatmul.mubr.f32.gmra.mrb[0].mxu0 %v1171
          %v1250 = vpop.f32.mrb[0].mxu0
          %v1251 = vadd.f32 %v1165, %v1250
          %v1252 = vpop.f32.mrb[0].mxu0
          %1253 = vmatprep.mubr.f32.mxu0 0.0
          %1254 = vmatmul.mubr.f32.gmra.mrb[0].mxu0 %v1174
          %v1255 = vpop.f32.mrb[0].mxu0
          %v1256 = vadd.f32 %v1165, %v1255
          %v1257 = vpop.f32.mrb[0].mxu0
          %1258 = vmatprep.mubr.f32.mxu0 0.0
          %1259 = vmatmul.mubr.f32.gmra.mrb[0].mxu0 %v1177
          %v1260 = vpop.f32.mrb[0].mxu0
          %v1261 = vadd.f32 %v1165, %v1260
          %v1262 = vpop.f32.mrb[0].mxu0
          %1263 = vdwg.mxu0
          %v1264 = vmax.f32 %v1246, 0.0
          %v1265 = vmax.f32 %v1251, 0.0
          %v1266 = vmax.f32 %v1256, 0.0
          %v1267 = vmax.f32 %v1261, 0.0
          %v1268 = vld [vmem:[%s5] sm:$0xff]
          %v1269 = vld [vmem:[%s5 + $0x8] sm:$0xff]
          %v1270 = vld [vmem:[%s5 + $0x10] sm:$0xff]
          %v1271 = vld [vmem:[%s5 + $0x18] sm:$0xff]
          %v1272 = vld [vmem:[%s6] sm:$0x1]
          %v1274 = vlaneseq
          %v1275 = vshrl.u32 %v1274, 7
          %v1276 = vsub.s32 0, %v1275
          %v1277 = vrot.slane %v1272, %v1276
          %v1280 = vsel %vm996, %v1264, 0
          %v1283 = vsel %vm996, %v1265, 0
          %v1286 = vsel %vm996, %v1266, 0
          %v1289 = vsel %vm996, %v1267, 0
          %1291 = vmatprep.subr.mxu0 0.0
          %1292 = vmatpush1.msra.mxu0 %v1268
          %1293 = vmatprep.subr.mxu0 0.0
          %1294 = vmatpush1.msra.mxu0 %v1269
          %1295 = vmatprep.subr.mxu0 0.0
          %1296 = vmatpush1.msra.mxu0 %v1270
          %1297 = vmatprep.subr.mxu0 0.0
          %1298 = vmatpush1.msra.mxu0 %v1271
          %1299 = vmatprep.subr.mxu0 0.0
          %1300 = vmatpush1.msra.mxu0 0.0
          %1301 = vmatprep.subr.mxu0 0.0
          %1302 = vmatpush1.msra.mxu0 0.0
          %1303 = vmatprep.subr.mxu0 0.0
          %1304 = vmatpush1.msra.mxu0 0.0
          %1305 = vmatprep.subr.mxu0 0.0
          %1306 = vmatpush1.msra.mxu0 0.0
          %1307 = vmatprep.subr.mxu0 0.0
          %1308 = vmatpush1.msra.mxu0 0.0
          %1309 = vmatprep.subr.mxu0 0.0
          %1310 = vmatpush1.msra.mxu0 0.0
          %1311 = vmatprep.subr.mxu0 0.0
          %1312 = vmatpush1.msra.mxu0 0.0
          %1313 = vmatprep.subr.mxu0 0.0
          %1314 = vmatpush1.msra.mxu0 0.0
          %1315 = vmatprep.subr.mxu0 0.0
          %1316 = vmatpush1.msra.mxu0 0.0
          %1317 = vmatprep.subr.mxu0 0.0
          %1318 = vmatpush1.msra.mxu0 0.0
          %1319 = vmatprep.subr.mxu0 0.0
          %1320 = vmatpush1.msra.mxu0 0.0
          %1321 = vmatprep.subr.mxu0 0.0
          %1322 = vmatpush1.msra.mxu0 0.0
          %1323 = vmatprep.subr.mxu0 0.0
          %1324 = vmatpush1.msra.mxu0 0.0
          %1325 = vmatprep.subr.mxu0 0.0
          %1326 = vmatpush1.msra.mxu0 0.0
          %1327 = vmatprep.subr.mxu0 0.0
          %1328 = vmatpush1.msra.mxu0 0.0
          %1329 = vmatprep.subr.mxu0 0.0
          %1330 = vmatpush1.msra.mxu0 0.0
          %1331 = vmatprep.subr.mxu0 0.0
          %1332 = vmatpush1.msra.mxu0 0.0
          %1333 = vmatprep.subr.mxu0 0.0
          %1334 = vmatpush1.msra.mxu0 0.0
          %1335 = vmatprep.subr.mxu0 0.0
          %1336 = vmatpush1.msra.mxu0 0.0
          %1337 = vmatprep.subr.mxu0 0.0
          %1338 = vmatpush1.msra.mxu0 0.0
          %1339 = vmatprep.subr.mxu0 0.0
          %1340 = vmatpush1.msra.mxu0 0.0
          %1341 = vmatprep.subr.mxu0 0.0
          %1342 = vmatpush1.msra.mxu0 0.0
          %1343 = vmatprep.subr.mxu0 0.0
          %1344 = vmatpush1.msra.mxu0 0.0
          %1345 = vmatprep.subr.mxu0 0.0
          %1346 = vmatpush1.msra.mxu0 0.0
          %1347 = vmatprep.subr.mxu0 0.0
          %1348 = vmatpush1.msra.mxu0 0.0
          %1349 = vmatprep.subr.mxu0 0.0
          %1350 = vmatpush1.msra.mxu0 0.0
          %1351 = vmatprep.subr.mxu0 0.0
          %1352 = vmatpush1.msra.mxu0 0.0
          %1353 = vmatprep.subr.mxu0 0.0
          %1354 = vmatpush1.msra.mxu0 0.0
          %1355 = vmatprep.mubr.f32.mxu0 0.0
          %1356 = vmatmul.mubr.f32.gmra.mrb[0].mxu0 %v1280
          %v1357 = vpop.f32.mrb[0].mxu0
          %v1358 = vadd.f32 %v1277, %v1357
          %v1359 = vpop.f32.mrb[0].mxu0
          %1360 = vmatprep.mubr.f32.mxu0 0.0
          %1361 = vmatmul.mubr.f32.gmra.mrb[0].mxu0 %v1283
          %v1362 = vpop.f32.mrb[0].mxu0
          %v1363 = vadd.f32 %v1277, %v1362
          %v1364 = vpop.f32.mrb[0].mxu0
          %1365 = vmatprep.mubr.f32.mxu0 0.0
          %1366 = vmatmul.mubr.f32.gmra.mrb[0].mxu0 %v1286
          %v1367 = vpop.f32.mrb[0].mxu0
          %v1368 = vadd.f32 %v1277, %v1367
          %v1369 = vpop.f32.mrb[0].mxu0
          %1370 = vmatprep.mubr.f32.mxu0 0.0
          %1371 = vmatmul.mubr.f32.gmra.mrb[0].mxu0 %v1289
          %v1372 = vpop.f32.mrb[0].mxu0
          %v1373 = vadd.f32 %v1277, %v1372
          %v1374 = vpop.f32.mrb[0].mxu0
          %1375 = vdwg.mxu0
          %vm1376 = vcmask 64512
          %1377 = vst.msk [vmem:[%s385] sm:$0xff] %vm1376, %v1358
          %1378 = vst.msk [vmem:[%s385 + $0x8] sm:$0xff] %vm1376, %v1363
          %1379 = vst.msk [vmem:[%s385 + $0x10] sm:$0xff] %vm1376, %v1368
          %1380 = vst.msk [vmem:[%s385 + $0x18] sm:$0xff] %vm1376, %v1373
        $region79: #{heter_model_forward.1} parent=66 // pred_fallthru
          _
        %s1381 = smul.u32 4, %s22
        %p1382 = scmp.lt.s32.totalorder %s1381, 7
        %s1383 = scalar_select %p1382, %s1381, 7
        %s1384 = smul.addr %s1383, 8
        %s1385 = scalar_lea.vmem %s7, %s1384
        // Predicated region
        $region80: #{heter_model_forward.1} parent=66 // pred_check
          %p1386 = pneg %p207
        $region81: #{heter_model_forward.1} parent=66 // pred_check_branch
          %1388 = sbr.rel (%p1386) target = $region83
        $region82: #{heter_model_forward.1} parent=66 // pred_region
          %s1389 = smul.u32 4, %s22
        $region83: #{heter_model_forward.1} parent=66 // pred_fallthru
          _
      $region67: #{heter_model_forward.1} parent=5 // pred_fallthru
        _
      %p1390 = scmp.le.s32.totalorder 2, %s13
      // Predicated region
      $region84: #{heter_model_forward.1} parent=5 // pred_check
        %p1391 = pneg %p1390
      $region85: #{heter_model_forward.1} parent=5 // pred_check_branch
        %1393 = sbr.rel (%p1391) target = $region87
      $region86: #{heter_model_forward.1} parent=5 // pred_region
        %s1394 = ssub.s32 %s13, 2
        // Predicated region
        $region88: #{heter_model_forward.1} parent=86 // pred_check
          %p1395 = pneg %p213
        $region89: #{heter_model_forward.1} parent=86 // pred_check_branch
          %1397 = sbr.rel (%p1395) target = $region91
        $region90: #{heter_model_forward.1} parent=86 // pred_region
          %s1398 = smul.u32 4, %s24
          %p1399 = scmp.lt.s32.totalorder %s1398, 7
          %s1400 = scalar_select %p1399, %s1398, 7
          %s1401 = smul.addr %s1400, 8
          %s1402 = scalar_lea.vmem %s7, %s1401
        $region91: #{heter_model_forward.1} parent=86 // pred_fallthru
          _
      $region87: #{heter_model_forward.1} parent=5 // pred_fallthru
        _
    $region6: #{heter_model_forward.1} parent=1 // loop_footer
      %s17 = sadd.s32 1, %s13
    $region7: #{heter_model_forward.1} parent=1 // loop_footer_branch
      %12 = sbr.rel target = $region3
    $region8: #{heter_model_forward.1} parent=1 // loop_exit
      _

</llo_original>
